<compile_context>
chip_gen: v7x
topology: tpu7x:2x2x1
jax: 0.10.0
libtpu: 0.0.40
codegen_flags: <defaults>
</compile_context>

<pallas_src>
import jax
import jax.numpy as jnp
from jax.experimental import pallas as pl
from jax.experimental.pallas import tpu as pltpu

_NORM_EPS = 1e-12            # F.normalize default eps (clamp on the norm)
_NORM_EPS2 = _NORM_EPS ** 2  # rsqrt(max(ss, eps^2)) == 1 / max(sqrt(ss), eps)


def _pre_extraction_kernel(
    x_ref,                 # [G, S, Din]   VMEM
    wt_ref, bt_ref,        # transfer conv+BN folded: [Din, Dout], [1, Dout]
    wvf_ref, bvf_ref,      # fused fc_v|fc1: [Dout, 2*HD], [1, 2*HD]
    w2_ref, b2_ref,        # fc2: [HD, Dout], [1, Dout]
    ab_ref,                # SMEM [2] = [sim_alpha, sim_beta]
    wa_ref, ba_ref,        # ConvBNReLURes1D net1 (conv+BN folded): [Dout, Dout], [1, Dout]
    wb_ref, bb_ref,        # ConvBNReLURes1D net2 (conv+BN folded): [Dout, Dout], [1, Dout]
    o_ref,                 # [G, Dout]
):
    G, S, Din = x_ref.shape
    HD = w2_ref.shape[0]
    Dout = wt_ref.shape[1]

    x = x_ref[...].reshape(G * S, Din)                                # all G groups as one slab

    # ---- transfer: ConvBNReLU1D (1x1 conv + folded BN + ReLU) ----
    h0 = jnp.dot(x, wt_ref[...], preferred_element_type=jnp.float32) + bt_ref[...]
    h0 = jnp.maximum(h0, 0.0)                                         # [G*S, Dout]

    # ---- ContextCluster (heads=1, head_dim=HD); fused fc_v | fc1 ----
    vf = jnp.dot(h0, wvf_ref[...], preferred_element_type=jnp.float32) + bvf_ref[...]  # [G*S, 2HD]
    value = vf[:, :HD].reshape(G, S, HD)
    f = vf[:, HD:].reshape(G, S, HD)

    center = jnp.mean(f, axis=1)                                      # [G, HD]
    value_center = jnp.mean(value, axis=1)                            # [G, HD]

    # F.normalize: x / max(||x||, eps) == x * rsqrt(max(||x||^2, eps^2))
    c_n = center * jax.lax.rsqrt(
        jnp.maximum(jnp.sum(center * center, axis=-1, keepdims=True), _NORM_EPS2))
    f_n = f * jax.lax.rsqrt(
        jnp.maximum(jnp.sum(f * f, axis=-1, keepdims=True), _NORM_EPS2))

    alpha = ab_ref[0]                                                 # scalar from SMEM
    beta = ab_ref[1]
    cos = jnp.sum(f_n * c_n[:, None, :], axis=-1, keepdims=True)      # [G, S, 1]
    sim = jax.nn.sigmoid(beta + alpha * cos)                          # [G, S, 1]

    agg = jnp.sum(value * sim, axis=1)                                # [G, HD]
    denom = jnp.sum(sim, axis=1) + 1.0                                # [G, 1]
    out_c = (agg + value_center) * pl.reciprocal(denom, approx=True)  # [G, HD]

    # rank-1 fc2:  (sim * out_c) @ W2  ==  sim * (out_c @ W2)
    oc2 = jnp.dot(out_c, w2_ref[...], preferred_element_type=jnp.float32)   # [G, Dout]
    cc = (h0.reshape(G, S, Dout) + sim * oc2[:, None, :] + b2_ref[...]
          ).reshape(G * S, Dout)                                      # ContextCluster residual

    # ---- ConvBNReLURes1D (groups=1, res_expansion=1) ----
    h1 = jnp.maximum(
        jnp.dot(cc, wa_ref[...], preferred_element_type=jnp.float32) + ba_ref[...], 0.0)
    h2 = jnp.dot(h1, wb_ref[...], preferred_element_type=jnp.float32) + bb_ref[...]
    h3 = jnp.maximum(h2 + cc, 0.0)                                    # [G*S, Dout]

    # ---- adaptive_max_pool1d(., 1): per-group max over the point axis ----
    o_ref[...] = jnp.max(h3.reshape(G, S, Dout), axis=1)              # [G, Dout] slab


def _choose_group_batch(bn, s, max_rows=1024):
    """Largest divisor G of bn with G*s <= max_rows (fills MXU sublanes, fewer grid steps)."""
    best = 1
    for g in range(1, bn + 1):
        if bn % g == 0 and g * s <= max_rows:
            best = g
    return best


def pre_extraction_pallas(x, packed_params, group_batch=None):
    """x: [b, n, s, d] float32 -> [b, out_channels, n]."""
    b, n, s, d = x.shape
    # torch: permute(0,1,3,2).reshape(-1, d, s); in channels-last layout this is just a flatten.
    xg = x.reshape(b * n, s, d).astype(jnp.float32)

    (wt, bt, wvf, bvf, w2, b2, ab, wa, ba, wb, bb) = packed_params
    BN, S, Din = xg.shape
    Dout = wt.shape[1]
    HD = w2.shape[0]
    HD2 = wvf.shape[1]

    G = group_batch if group_batch is not None else _choose_group_batch(BN, S)
    assert BN % G == 0, (BN, G)

    const2d = lambda shp: pl.BlockSpec(shp, lambda g: (0, 0))   # whole weight, constant per step

    out = pl.pallas_call(
        _pre_extraction_kernel,
        out_shape=jax.ShapeDtypeStruct((BN, Dout), jnp.float32),
        grid_spec=pltpu.PrefetchScalarGridSpec(
            num_scalar_prefetch=0,
            grid=(BN // G,),
            in_specs=[
                pl.BlockSpec((G, S, Din), lambda g: (g, 0, 0)),          # x slab (G groups)
                const2d((Din, Dout)), const2d((1, Dout)),                # transfer (BN folded)
                const2d((Dout, HD2)), const2d((1, HD2)),                 # fused fc_v | fc1
                const2d((HD, Dout)), const2d((1, Dout)),                 # fc2
                pl.BlockSpec(memory_space=pltpu.MemorySpace.SMEM),       # [alpha, beta] scalars
                const2d((Dout, Dout)), const2d((1, Dout)),               # res net1 (BN folded)
                const2d((Dout, Dout)), const2d((1, Dout)),               # res net2 (BN folded)
            ],
            out_specs=pl.BlockSpec((G, Dout), lambda g: (g, 0)),
        ),
        compiler_params=pltpu.CompilerParams(
            dimension_semantics=("parallel",),   # independent groups -> megacore-shardable (v7x)
        ),
    )(xg, wt, bt, wvf, bvf, w2, b2, ab, wa, ba, wb, bb)

    y = out.reshape(b, n, Dout)            # [b, n, Dout]
    return jnp.transpose(y, (0, 2, 1))     # [b, Dout, n]


# ---------------------------------------------------------------------------
# deterministic parameter construction (synthetic; BN folded in eval mode)
# ---------------------------------------------------------------------------
def _fold_conv_bn(key, cin, cout):
    k = jax.random.split(key, 6)
    w = jax.random.normal(k[0], (cin, cout), jnp.float32) * 0.1
    bias = jax.random.normal(k[1], (cout,), jnp.float32) * 0.1
    gamma = 1.0 + 0.1 * jax.random.normal(k[2], (cout,), jnp.float32)
    beta = 0.1 * jax.random.normal(k[3], (cout,), jnp.float32)
    mean = 0.05 * jax.random.normal(k[4], (cout,), jnp.float32)
    var = 1.0 + 0.1 * jax.random.uniform(k[5], (cout,), jnp.float32)
    scale = gamma / jnp.sqrt(var + 1e-5)
    w_f = w * scale[None, :]
    b_f = (bias - mean) * scale + beta
    return w_f, b_f[None, :]


def make_params(key, din, dout, hd):
    ks = jax.random.split(key, 8)
    wt, bt = _fold_conv_bn(ks[0], din, dout)                 # transfer
    wv = jax.random.normal(ks[1], (dout, hd), jnp.float32) * 0.1
    bv = (jax.random.normal(ks[2], (hd,), jnp.float32) * 0.1)[None, :]
    w1 = jax.random.normal(ks[3], (dout, hd), jnp.float32) * 0.1
    b1 = (jax.random.normal(ks[4], (hd,), jnp.float32) * 0.1)[None, :]
    w2 = jax.random.normal(ks[5], (hd, dout), jnp.float32) * 0.1
    b2 = (jax.random.normal(ks[6], (dout,), jnp.float32) * 0.1)[None, :]
    alpha = jnp.ones((), jnp.float32)      # sim_alpha init = 1
    beta = jnp.zeros((), jnp.float32)      # sim_beta  init = 0
    ka, kb = jax.random.split(ks[7])
    wa, ba = _fold_conv_bn(ka, dout, dout)                   # res block net1
    wb, bb = _fold_conv_bn(kb, dout, dout)                   # res block net2
    return (wt, bt, wv, bv, w1, b1, w2, b2, alpha, beta, wa, ba, wb, bb)


def pack_params(params):
    """Host-side packing: fuse fc_v|fc1 weights, stack alpha/beta for SMEM."""
    (wt, bt, wv, bv, w1, b1, w2, b2, alpha, beta, wa, ba, wb, bb) = params
    wvf = jnp.concatenate([wv, w1], axis=1)        # [Dout, 2*HD]
    bvf = jnp.concatenate([bv, b1], axis=1)        # [1, 2*HD]
    ab = jnp.stack([jnp.asarray(alpha, jnp.float32).reshape(()),
                    jnp.asarray(beta, jnp.float32).reshape(())])   # [2]
    return (wt, bt, wvf, bvf, w2, b2, ab, wa, ba, wb, bb)


# plain-JAX reference (same math, same folded params) for a correctness check
def pre_extraction_ref(x, params):
    b, n, s, d = x.shape
    (wt, bt, wv, bv, w1, b1, w2, b2, alpha, beta, wa, ba, wb, bb) = params
    xg = x.reshape(b * n, s, d).astype(jnp.float32)
    h0 = jnp.maximum(xg @ wt + bt, 0.0)
    value = h0 @ wv + bv
    f = h0 @ w1 + b1
    center = f.mean(1, keepdims=True)
    vc = value.mean(1, keepdims=True)
    c_n = center / jnp.maximum(jnp.linalg.norm(center, axis=-1, keepdims=True), _NORM_EPS)
    f_n = f / jnp.maximum(jnp.linalg.norm(f, axis=-1, keepdims=True), _NORM_EPS)
    cos = jnp.sum(f_n * c_n, axis=-1, keepdims=True)
    sim = jax.nn.sigmoid(beta + alpha * cos)
    agg = jnp.sum(value * sim, axis=1, keepdims=True)
    out_c = (agg + vc) / (jnp.sum(sim, axis=1, keepdims=True) + 1.0)
    out = out_c * sim
    cc = h0 + (out @ w2 + b2)
    h1 = jnp.maximum(cc @ wa + ba, 0.0)
    h3 = jnp.maximum(h1 @ wb + bb + cc, 0.0)
    y = jnp.max(h3, axis=1)                  # [BN, Dout]
    return jnp.transpose(y.reshape(b, n, -1), (0, 2, 1))


if __name__ == "__main__":
    # PreExtraction(channels=4, out_channels=32) with use_xyz=True:
    #   in_channels = 3 + 2*4 = 11, heads=1, head_dim = max(32//4, 32) = 32
    b, n, s, channels = 2, 4, 16, 4
    din = 3 + 2 * channels
    dout = 32
    hd = max(dout // 4, 32)

    key = jax.random.PRNGKey(0)
    kx, kp = jax.random.split(key)
    x = jax.random.normal(kx, (b, n, s, din), jnp.float32)
    params = make_params(kp, din, dout, hd)

    y = jax.block_until_ready(pre_extraction_pallas(x, pack_params(params)))
    y_ref = jax.block_until_ready(pre_extraction_ref(x, params))

    assert y.shape == (b, dout, n), y.shape
    max_err = float(jnp.max(jnp.abs(y - y_ref)))
    assert jnp.allclose(y, y_ref, rtol=2e-3, atol=2e-3), max_err
    print("KERNEL_OK")
</pallas_src>

<mosaic_0001>
module attributes {stable_mosaic.version = 11 : i64} {
  func.func @_pre_extraction_kernel(%arg0: i32, %arg1: memref<8x16x11xf32, #tpu.memory_space<vmem>>, %arg2: memref<11x32xf32, #tpu.memory_space<vmem>>, %arg3: memref<1x32xf32, #tpu.memory_space<vmem>>, %arg4: memref<32x64xf32, #tpu.memory_space<vmem>>, %arg5: memref<1x64xf32, #tpu.memory_space<vmem>>, %arg6: memref<32x32xf32, #tpu.memory_space<vmem>>, %arg7: memref<1x32xf32, #tpu.memory_space<vmem>>, %arg8: memref<2xf32, #tpu.memory_space<smem>>, %arg9: memref<32x32xf32, #tpu.memory_space<vmem>>, %arg10: memref<1x32xf32, #tpu.memory_space<vmem>>, %arg11: memref<32x32xf32, #tpu.memory_space<vmem>>, %arg12: memref<1x32xf32, #tpu.memory_space<vmem>>, %arg13: memref<8x32xf32, #tpu.memory_space<vmem>>) attributes {dimension_semantics = [#tpu.dimension_semantics<parallel>], iteration_bounds = array<i64: 1>, scalar_prefetch = 0 : i64, scratch_operands = 0 : i64, tpu.core_type = #tpu.core_type<tc>, window_params = [{transform_indices = @transform_0, window_bounds = array<i64: 8, 16, 11>}, {pipeline_mode = #tpu.pipeline_mode<synchronous>, transform_indices = @transform_1, window_bounds = array<i64: 11, 32>}, {pipeline_mode = #tpu.pipeline_mode<synchronous>, transform_indices = @transform_2, window_bounds = array<i64: 1, 32>}, {pipeline_mode = #tpu.pipeline_mode<synchronous>, transform_indices = @transform_3, window_bounds = array<i64: 32, 64>}, {pipeline_mode = #tpu.pipeline_mode<synchronous>, transform_indices = @transform_4, window_bounds = array<i64: 1, 64>}, {pipeline_mode = #tpu.pipeline_mode<synchronous>, transform_indices = @transform_5, window_bounds = array<i64: 32, 32>}, {pipeline_mode = #tpu.pipeline_mode<synchronous>, transform_indices = @transform_6, window_bounds = array<i64: 1, 32>}, {transform_indices = @transform_7, window_bounds = array<i64: 2>}, {pipeline_mode = #tpu.pipeline_mode<synchronous>, transform_indices = @transform_8, window_bounds = array<i64: 32, 32>}, {pipeline_mode = #tpu.pipeline_mode<synchronous>, transform_indices = @transform_9, window_bounds = array<i64: 1, 32>}, {pipeline_mode = #tpu.pipeline_mode<synchronous>, transform_indices = @transform_10, window_bounds = array<i64: 32, 32>}, {pipeline_mode = #tpu.pipeline_mode<synchronous>, transform_indices = @transform_11, window_bounds = array<i64: 1, 32>}, {transform_indices = @transform_12, window_bounds = array<i64: 8, 32>}]} {
    %c0 = arith.constant 0 : index
    %c0_0 = arith.constant 0 : index
    %c0_1 = arith.constant 0 : index
    %0 = vector.load %arg1[%c0, %c0_0, %c0_1] : memref<8x16x11xf32, #tpu.memory_space<vmem>>, vector<8x16x11xf32>
    %1 = vector.shape_cast %0 : vector<8x16x11xf32> to vector<128x11xf32>
    %c0_2 = arith.constant 0 : index
    %c0_3 = arith.constant 0 : index
    %2 = vector.load %arg2[%c0_2, %c0_3] : memref<11x32xf32, #tpu.memory_space<vmem>>, vector<11x32xf32>
    %cst = arith.constant dense<0.000000e+00> : vector<128x32xf32>
    %3 = tpu.matmul %1, %2, %cst {dimension_numbers = #tpu.dot_dimension_numbers<[1], [0], [0], [1], [0, 0, 1, 1], [], []>} : vector<128x11xf32>, vector<11x32xf32>, vector<128x32xf32> -> vector<128x32xf32>
    %c0_4 = arith.constant 0 : index
    %c0_5 = arith.constant 0 : index
    %4 = vector.load %arg3[%c0_4, %c0_5] : memref<1x32xf32, #tpu.memory_space<vmem>>, vector<1x32xf32>
    %5 = vector.broadcast %4 : vector<1x32xf32> to vector<128x32xf32>
    %6 = arith.addf %3, %5 : vector<128x32xf32>
    %cst_6 = arith.constant 0.000000e+00 : f32
    %7 = vector.broadcast %cst_6 : f32 to vector<128x32xf32>
    %8 = arith.maximumf %6, %7 : vector<128x32xf32>
    %c0_7 = arith.constant 0 : index
    %c0_8 = arith.constant 0 : index
    %9 = vector.load %arg4[%c0_7, %c0_8] : memref<32x64xf32, #tpu.memory_space<vmem>>, vector<32x64xf32>
    %cst_9 = arith.constant dense<0.000000e+00> : vector<128x64xf32>
    %10 = tpu.matmul %8, %9, %cst_9 {dimension_numbers = #tpu.dot_dimension_numbers<[1], [0], [0], [1], [0, 0, 1, 1], [], []>} : vector<128x32xf32>, vector<32x64xf32>, vector<128x64xf32> -> vector<128x64xf32>
    %c0_10 = arith.constant 0 : index
    %c0_11 = arith.constant 0 : index
    %11 = vector.load %arg5[%c0_10, %c0_11] : memref<1x64xf32, #tpu.memory_space<vmem>>, vector<1x64xf32>
    %12 = vector.broadcast %11 : vector<1x64xf32> to vector<128x64xf32>
    %13 = arith.addf %10, %12 : vector<128x64xf32>
    %14 = vector.extract_strided_slice %13 {offsets = [0, 0], sizes = [128, 32], strides = [1, 1]} : vector<128x64xf32> to vector<128x32xf32>
    %15 = vector.shape_cast %14 : vector<128x32xf32> to vector<8x16x32xf32>
    %16 = vector.extract_strided_slice %13 {offsets = [0, 32], sizes = [128, 32], strides = [1, 1]} : vector<128x64xf32> to vector<128x32xf32>
    %17 = vector.shape_cast %16 : vector<128x32xf32> to vector<8x16x32xf32>
    %cst_12 = arith.constant dense<0.000000e+00> : vector<8x32xf32>
    %18 = vector.multi_reduction <add>, %17, %cst_12 [1] : vector<8x16x32xf32> to vector<8x32xf32>
    %cst_13 = arith.constant 1.600000e+01 : f32
    %19 = vector.broadcast %cst_13 : f32 to vector<8x32xf32>
    %20 = arith.divf %18, %19 : vector<8x32xf32>
    %cst_14 = arith.constant dense<0.000000e+00> : vector<8x32xf32>
    %21 = vector.multi_reduction <add>, %15, %cst_14 [1] : vector<8x16x32xf32> to vector<8x32xf32>
    %cst_15 = arith.constant 1.600000e+01 : f32
    %22 = vector.broadcast %cst_15 : f32 to vector<8x32xf32>
    %23 = arith.divf %21, %22 : vector<8x32xf32>
    %24 = arith.mulf %20, %20 : vector<8x32xf32>
    %cst_16 = arith.constant dense<0.000000e+00> : vector<8xf32>
    %25 = vector.multi_reduction <add>, %24, %cst_16 [1] : vector<8x32xf32> to vector<8xf32>
    %26 = vector.shape_cast %25 : vector<8xf32> to vector<8x1xf32>
    %cst_17 = arith.constant 1.000000e-24 : f32
    %27 = vector.broadcast %cst_17 : f32 to vector<8x1xf32>
    %28 = arith.maximumf %26, %27 : vector<8x1xf32>
    %29 = math.rsqrt %28 : vector<8x1xf32>
    %30 = vector.broadcast %29 : vector<8x1xf32> to vector<8x32xf32>
    %31 = arith.mulf %20, %30 : vector<8x32xf32>
    %32 = arith.mulf %17, %17 : vector<8x16x32xf32>
    %cst_18 = arith.constant dense<0.000000e+00> : vector<8x16xf32>
    %33 = vector.multi_reduction <add>, %32, %cst_18 [2] : vector<8x16x32xf32> to vector<8x16xf32>
    %34 = vector.shape_cast %33 : vector<8x16xf32> to vector<8x16x1xf32>
    %cst_19 = arith.constant 1.000000e-24 : f32
    %35 = vector.broadcast %cst_19 : f32 to vector<8x16x1xf32>
    %36 = arith.maximumf %34, %35 : vector<8x16x1xf32>
    %37 = math.rsqrt %36 : vector<8x16x1xf32>
    %38 = vector.broadcast %37 : vector<8x16x1xf32> to vector<8x16x32xf32>
    %39 = arith.mulf %17, %38 : vector<8x16x32xf32>
    %c0_20 = arith.constant 0 : index
    %40 = memref.load %arg8[%c0_20] : memref<2xf32, #tpu.memory_space<smem>>
    %c1 = arith.constant 1 : index
    %41 = memref.load %arg8[%c1] : memref<2xf32, #tpu.memory_space<smem>>
    %42 = vector.shape_cast %31 : vector<8x32xf32> to vector<8x1x32xf32>
    %43 = vector.broadcast %42 : vector<8x1x32xf32> to vector<8x16x32xf32>
    %44 = arith.mulf %39, %43 : vector<8x16x32xf32>
    %cst_21 = arith.constant dense<0.000000e+00> : vector<8x16xf32>
    %45 = vector.multi_reduction <add>, %44, %cst_21 [2] : vector<8x16x32xf32> to vector<8x16xf32>
    %46 = vector.shape_cast %45 : vector<8x16xf32> to vector<8x16x1xf32>
    %47 = vector.broadcast %40 : f32 to vector<8x16x1xf32>
    %48 = arith.mulf %47, %46 : vector<8x16x1xf32>
    %49 = vector.broadcast %41 : f32 to vector<8x16x1xf32>
    %50 = arith.addf %49, %48 : vector<8x16x1xf32>
    %51 = arith.negf %50 : vector<8x16x1xf32>
    %52 = math.exp %51 : vector<8x16x1xf32>
    %cst_22 = arith.constant 1.000000e+00 : f32
    %53 = vector.broadcast %cst_22 : f32 to vector<8x16x1xf32>
    %54 = arith.addf %53, %52 : vector<8x16x1xf32>
    %55 = arith.divf %53, %54 : vector<8x16x1xf32>
    %56 = vector.broadcast %55 : vector<8x16x1xf32> to vector<8x16x32xf32>
    %57 = arith.mulf %15, %56 : vector<8x16x32xf32>
    %cst_23 = arith.constant dense<0.000000e+00> : vector<8x32xf32>
    %58 = vector.multi_reduction <add>, %57, %cst_23 [1] : vector<8x16x32xf32> to vector<8x32xf32>
    %cst_24 = arith.constant dense<0.000000e+00> : vector<8x1xf32>
    %59 = vector.multi_reduction <add>, %55, %cst_24 [1] : vector<8x16x1xf32> to vector<8x1xf32>
    %cst_25 = arith.constant 1.000000e+00 : f32
    %60 = vector.broadcast %cst_25 : f32 to vector<8x1xf32>
    %61 = arith.addf %59, %60 : vector<8x1xf32>
    %62 = arith.addf %58, %23 : vector<8x32xf32>
    %63 = tpu.reciprocal %61 {approx = true} : vector<8x1xf32> -> vector<8x1xf32>
    %64 = vector.broadcast %63 : vector<8x1xf32> to vector<8x32xf32>
    %65 = arith.mulf %62, %64 : vector<8x32xf32>
    %c0_26 = arith.constant 0 : index
    %c0_27 = arith.constant 0 : index
    %66 = vector.load %arg6[%c0_26, %c0_27] : memref<32x32xf32, #tpu.memory_space<vmem>>, vector<32x32xf32>
    %cst_28 = arith.constant dense<0.000000e+00> : vector<8x32xf32>
    %67 = tpu.matmul %65, %66, %cst_28 {dimension_numbers = #tpu.dot_dimension_numbers<[1], [0], [0], [1], [0, 0, 1, 1], [], []>} : vector<8x32xf32>, vector<32x32xf32>, vector<8x32xf32> -> vector<8x32xf32>
    %68 = vector.shape_cast %8 : vector<128x32xf32> to vector<8x16x32xf32>
    %69 = vector.shape_cast %67 : vector<8x32xf32> to vector<8x1x32xf32>
    %70 = vector.broadcast %55 : vector<8x16x1xf32> to vector<8x16x32xf32>
    %71 = vector.broadcast %69 : vector<8x1x32xf32> to vector<8x16x32xf32>
    %72 = arith.mulf %70, %71 : vector<8x16x32xf32>
    %73 = arith.addf %68, %72 : vector<8x16x32xf32>
    %c0_29 = arith.constant 0 : index
    %c0_30 = arith.constant 0 : index
    %74 = vector.load %arg7[%c0_29, %c0_30] : memref<1x32xf32, #tpu.memory_space<vmem>>, vector<1x32xf32>
    %75 = vector.shape_cast %74 : vector<1x32xf32> to vector<1x1x32xf32>
    %76 = vector.broadcast %75 : vector<1x1x32xf32> to vector<8x16x32xf32>
    %77 = arith.addf %73, %76 : vector<8x16x32xf32>
    %78 = vector.shape_cast %77 : vector<8x16x32xf32> to vector<128x32xf32>
    %c0_31 = arith.constant 0 : index
    %c0_32 = arith.constant 0 : index
    %79 = vector.load %arg9[%c0_31, %c0_32] : memref<32x32xf32, #tpu.memory_space<vmem>>, vector<32x32xf32>
    %cst_33 = arith.constant dense<0.000000e+00> : vector<128x32xf32>
    %80 = tpu.matmul %78, %79, %cst_33 {dimension_numbers = #tpu.dot_dimension_numbers<[1], [0], [0], [1], [0, 0, 1, 1], [], []>} : vector<128x32xf32>, vector<32x32xf32>, vector<128x32xf32> -> vector<128x32xf32>
    %c0_34 = arith.constant 0 : index
    %c0_35 = arith.constant 0 : index
    %81 = vector.load %arg10[%c0_34, %c0_35] : memref<1x32xf32, #tpu.memory_space<vmem>>, vector<1x32xf32>
    %82 = vector.broadcast %81 : vector<1x32xf32> to vector<128x32xf32>
    %83 = arith.addf %80, %82 : vector<128x32xf32>
    %cst_36 = arith.constant 0.000000e+00 : f32
    %84 = vector.broadcast %cst_36 : f32 to vector<128x32xf32>
    %85 = arith.maximumf %83, %84 : vector<128x32xf32>
    %c0_37 = arith.constant 0 : index
    %c0_38 = arith.constant 0 : index
    %86 = vector.load %arg11[%c0_37, %c0_38] : memref<32x32xf32, #tpu.memory_space<vmem>>, vector<32x32xf32>
    %cst_39 = arith.constant dense<0.000000e+00> : vector<128x32xf32>
    %87 = tpu.matmul %85, %86, %cst_39 {dimension_numbers = #tpu.dot_dimension_numbers<[1], [0], [0], [1], [0, 0, 1, 1], [], []>} : vector<128x32xf32>, vector<32x32xf32>, vector<128x32xf32> -> vector<128x32xf32>
    %c0_40 = arith.constant 0 : index
    %c0_41 = arith.constant 0 : index
    %88 = vector.load %arg12[%c0_40, %c0_41] : memref<1x32xf32, #tpu.memory_space<vmem>>, vector<1x32xf32>
    %89 = vector.broadcast %88 : vector<1x32xf32> to vector<128x32xf32>
    %90 = arith.addf %87, %89 : vector<128x32xf32>
    %91 = arith.addf %90, %78 : vector<128x32xf32>
    %cst_42 = arith.constant 0.000000e+00 : f32
    %92 = vector.broadcast %cst_42 : f32 to vector<128x32xf32>
    %93 = arith.maximumf %91, %92 : vector<128x32xf32>
    %94 = vector.shape_cast %93 : vector<128x32xf32> to vector<8x16x32xf32>
    %cst_43 = arith.constant dense<0xFF800000> : vector<8x32xf32>
    %95 = vector.multi_reduction <maximumf>, %94, %cst_43 [1] : vector<8x16x32xf32> to vector<8x32xf32>
    %c0_44 = arith.constant 0 : index
    %c0_45 = arith.constant 0 : index
    %96 = vector.load %arg13[%c0_44, %c0_45] : memref<8x32xf32, #tpu.memory_space<vmem>>, vector<8x32xf32>
    tpu.vector_store %arg13[%c0_44, %c0_45], %95 {strides = array<i32>} : memref<8x32xf32, #tpu.memory_space<vmem>>, vector<8x32xf32>,
    return
  }
  func.func @transform_0(%arg0: i32) -> (i32, i32, i32) {
    %c0_i32 = arith.constant 0 : i32
    %c0_i32_0 = arith.constant 0 : i32
    %c0_i32_1 = arith.constant 0 : i32
    return %arg0, %c0_i32, %c0_i32_0 : i32, i32, i32
  }
  func.func @transform_1(%arg0: i32) -> (i32, i32) {
    %c0_i32 = arith.constant 0 : i32
    %c0_i32_0 = arith.constant 0 : i32
    %c0_i32_1 = arith.constant 0 : i32
    return %c0_i32, %c0_i32_0 : i32, i32
  }
  func.func @transform_2(%arg0: i32) -> (i32, i32) {
    %c0_i32 = arith.constant 0 : i32
    %c0_i32_0 = arith.constant 0 : i32
    %c0_i32_1 = arith.constant 0 : i32
    return %c0_i32, %c0_i32_0 : i32, i32
  }
  func.func @transform_3(%arg0: i32) -> (i32, i32) {
    %c0_i32 = arith.constant 0 : i32
    %c0_i32_0 = arith.constant 0 : i32
    %c0_i32_1 = arith.constant 0 : i32
    return %c0_i32, %c0_i32_0 : i32, i32
  }
  func.func @transform_4(%arg0: i32) -> (i32, i32) {
    %c0_i32 = arith.constant 0 : i32
    %c0_i32_0 = arith.constant 0 : i32
    %c0_i32_1 = arith.constant 0 : i32
    return %c0_i32, %c0_i32_0 : i32, i32
  }
  func.func @transform_5(%arg0: i32) -> (i32, i32) {
    %c0_i32 = arith.constant 0 : i32
    %c0_i32_0 = arith.constant 0 : i32
    %c0_i32_1 = arith.constant 0 : i32
    return %c0_i32, %c0_i32_0 : i32, i32
  }
  func.func @transform_6(%arg0: i32) -> (i32, i32) {
    %c0_i32 = arith.constant 0 : i32
    %c0_i32_0 = arith.constant 0 : i32
    %c0_i32_1 = arith.constant 0 : i32
    return %c0_i32, %c0_i32_0 : i32, i32
  }
  func.func @transform_7(%arg0: i32) -> i32 {
    %c0_i32 = arith.constant 0 : i32
    %c0_i32_0 = arith.constant 0 : i32
    return %c0_i32 : i32
  }
  func.func @transform_8(%arg0: i32) -> (i32, i32) {
    %c0_i32 = arith.constant 0 : i32
    %c0_i32_0 = arith.constant 0 : i32
    %c0_i32_1 = arith.constant 0 : i32
    return %c0_i32, %c0_i32_0 : i32, i32
  }
  func.func @transform_9(%arg0: i32) -> (i32, i32) {
    %c0_i32 = arith.constant 0 : i32
    %c0_i32_0 = arith.constant 0 : i32
    %c0_i32_1 = arith.constant 0 : i32
    return %c0_i32, %c0_i32_0 : i32, i32
  }
  func.func @transform_10(%arg0: i32) -> (i32, i32) {
    %c0_i32 = arith.constant 0 : i32
    %c0_i32_0 = arith.constant 0 : i32
    %c0_i32_1 = arith.constant 0 : i32
    return %c0_i32, %c0_i32_0 : i32, i32
  }
  func.func @transform_11(%arg0: i32) -> (i32, i32) {
    %c0_i32 = arith.constant 0 : i32
    %c0_i32_0 = arith.constant 0 : i32
    %c0_i32_1 = arith.constant 0 : i32
    return %c0_i32, %c0_i32_0 : i32, i32
  }
  func.func @transform_12(%arg0: i32) -> (i32, i32) {
    %c0_i32 = arith.constant 0 : i32
    %c0_i32_0 = arith.constant 0 : i32
    return %arg0, %c0_i32 : i32, i32
  }
}

</mosaic_0001>

<llo_original>
// kernel: tpu_custom_call.1
$region0: #{tpu_custom_call.1}
  #allocation0 [shape = 'u32[]', space=smem, size = 0x4, offset = 0x4, fixed_abs, tag = 'smem constant byte address 0x4 - core index']
  #allocation1 [shape = 'u32[144,128]{1,0:T(1,128)}', space=vmem, size = 0x12000, scoped, tag = 'internal scratch']
  %s0 = inlined_call_operand.vmem [shape: f32[8,16,11], index: 0, kind: input, shape index: {}]
  %s1 = inlined_call_operand.vmem [shape: f32[11,32], index: 1, kind: input, shape index: {}]
  %s2 = inlined_call_operand.vmem [shape: f32[1,32], index: 2, kind: input, shape index: {}]
  %s3 = inlined_call_operand.vmem [shape: f32[32,64], index: 3, kind: input, shape index: {}]
  %s4 = inlined_call_operand.vmem [shape: f32[1,64], index: 4, kind: input, shape index: {}]
  %s5 = inlined_call_operand.vmem [shape: f32[32,32], index: 5, kind: input, shape index: {}]
  %s6 = inlined_call_operand.vmem [shape: f32[1,32], index: 6, kind: input, shape index: {}]
  %s7 = inlined_call_operand.vmem [shape: f32[2], index: 7, kind: input, shape index: {}]
  %s8 = inlined_call_operand.vmem [shape: f32[32,32], index: 8, kind: input, shape index: {}]
  %s9 = inlined_call_operand.vmem [shape: f32[1,32], index: 9, kind: input, shape index: {}]
  %s10 = inlined_call_operand.vmem [shape: f32[32,32], index: 10, kind: input, shape index: {}]
  %s11 = inlined_call_operand.vmem [shape: f32[1,32], index: 11, kind: input, shape index: {}]
  %s12 = inlined_call_operand.hbm [shape: f32[8,32], index: 12, kind: output, shape index: {}]
  %s13 = sld [smem:[#allocation0]]
  $region62: #{tpu_custom_call.1} parent=0
    _
  %s15 = ssub.s32 1, %s13
  %s16 = scalar_select 0, %s15, %s13
  $region1: #{tpu_custom_call.1} parent=0
    #allocation2 [shape = 'u8[512]{0}', space=smem, size = 0x200, scoped, tag = 'input window, operand 7, single buffered']
    #allocation3 [shape = 's32[1]{0}', space=sflag, size = 0x4, scoped, tag = 'scoped memory for tpu_custom_call.1']
    #allocation4 [shape = 's32[1]{0}', space=sflag, size = 0x4, scoped, tag = 'scoped memory for tpu_custom_call.1']
    #allocation5 [shape = 'u8[4096]{0}', space=vmem, size = 0x1000, scoped, tag = 'output window, operand 0, single buffered']
    %17 = vsyncpa [#allocation4], 0
    %18 = vsyncpa [#allocation3], 0
    // Predicated region
    $region2: #{tpu_custom_call.1} parent=1 // pred_check
      _
    $region3: #{tpu_custom_call.1} parent=1 // pred_check_branch
      %20 = sbr.rel (0) target = $region5
    $region4: #{tpu_custom_call.1} parent=1 // pred_region
      _
    $region5: #{tpu_custom_call.1} parent=1 // pred_fallthru
      _
    // Predicated region
    $region6: #{tpu_custom_call.1} parent=1 // pred_check
      _
    $region7: #{tpu_custom_call.1} parent=1 // pred_check_branch
      %22 = sbr.rel (0) target = $region9
    $region8: #{tpu_custom_call.1} parent=1 // pred_region
      _
    $region9: #{tpu_custom_call.1} parent=1 // pred_fallthru
      _
    // Predicated region
    $region10: #{tpu_custom_call.1} parent=1 // pred_check
      _
    $region11: #{tpu_custom_call.1} parent=1 // pred_check_branch
      %24 = sbr.rel (0) target = $region13
    $region12: #{tpu_custom_call.1} parent=1 // pred_region
      _
    $region13: #{tpu_custom_call.1} parent=1 // pred_fallthru
      _
    // Predicated region
    $region14: #{tpu_custom_call.1} parent=1 // pred_check
      _
    $region15: #{tpu_custom_call.1} parent=1 // pred_check_branch
      %26 = sbr.rel (0) target = $region17
    $region16: #{tpu_custom_call.1} parent=1 // pred_region
      _
    $region17: #{tpu_custom_call.1} parent=1 // pred_fallthru
      _
    // Predicated region
    $region18: #{tpu_custom_call.1} parent=1 // pred_check
      _
    $region19: #{tpu_custom_call.1} parent=1 // pred_check_branch
      %28 = sbr.rel (0) target = $region21
    $region20: #{tpu_custom_call.1} parent=1 // pred_region
      _
    $region21: #{tpu_custom_call.1} parent=1 // pred_fallthru
      _
    // Predicated region
    $region22: #{tpu_custom_call.1} parent=1 // pred_check
      _
    $region23: #{tpu_custom_call.1} parent=1 // pred_check_branch
      %30 = sbr.rel (0) target = $region25
    $region24: #{tpu_custom_call.1} parent=1 // pred_region
      _
    $region25: #{tpu_custom_call.1} parent=1 // pred_fallthru
      _
    // Predicated region
    $region26: #{tpu_custom_call.1} parent=1 // pred_check
      _
    $region27: #{tpu_custom_call.1} parent=1 // pred_check_branch
      %32 = sbr.rel (0) target = $region29
    $region28: #{tpu_custom_call.1} parent=1 // pred_region
      _
    $region29: #{tpu_custom_call.1} parent=1 // pred_fallthru
      _
    // Predicated region
    $region30: #{tpu_custom_call.1} parent=1 // pred_check
      _
    $region31: #{tpu_custom_call.1} parent=1 // pred_check_branch
      %34 = sbr.rel (0) target = $region33
    $region32: #{tpu_custom_call.1} parent=1 // pred_region
      %s36 = ssub.s32 16, 16
      %37 = vsyncadd [#allocation4], %s36
      %s39 = sshll.u32 %s7, 4
      %s40 = int_to_ptr.vmem [resolvable:$true] %s39
      %42 = dma.vmem_to_smem %s40, 16, [#allocation2], [#allocation4]
    $region33: #{tpu_custom_call.1} parent=1 // pred_fallthru
      _
    // Predicated region
    $region34: #{tpu_custom_call.1} parent=1 // pred_check
      _
    $region35: #{tpu_custom_call.1} parent=1 // pred_check_branch
      %44 = sbr.rel (0) target = $region37
    $region36: #{tpu_custom_call.1} parent=1 // pred_region
      _
    $region37: #{tpu_custom_call.1} parent=1 // pred_fallthru
      _
    // Predicated region
    $region38: #{tpu_custom_call.1} parent=1 // pred_check
      _
    $region39: #{tpu_custom_call.1} parent=1 // pred_check_branch
      %46 = sbr.rel (0) target = $region41
    $region40: #{tpu_custom_call.1} parent=1 // pred_region
      _
    $region41: #{tpu_custom_call.1} parent=1 // pred_fallthru
      _
    // Predicated region
    $region42: #{tpu_custom_call.1} parent=1 // pred_check
      _
    $region43: #{tpu_custom_call.1} parent=1 // pred_check_branch
      %48 = sbr.rel (0) target = $region45
    $region44: #{tpu_custom_call.1} parent=1 // pred_region
      _
    $region45: #{tpu_custom_call.1} parent=1 // pred_fallthru
      _
    // Predicated region
    $region46: #{tpu_custom_call.1} parent=1 // pred_check
      _
    $region47: #{tpu_custom_call.1} parent=1 // pred_check_branch
      %50 = sbr.rel (0) target = $region49
    $region48: #{tpu_custom_call.1} parent=1 // pred_region
      _
    $region49: #{tpu_custom_call.1} parent=1 // pred_fallthru
      _
    // Predicated region
    $region50: #{tpu_custom_call.1} parent=1 // pred_check
      _
    $region51: #{tpu_custom_call.1} parent=1 // pred_check_branch
      %52 = sbr.rel (0) target = $region53
    $region52: #{tpu_custom_call.1} parent=1 // pred_region
      %53 = dma.done [#allocation4], 16
    $region53: #{tpu_custom_call.1} parent=1 // pred_fallthru
      _
    %54 = sfence
    %v55 = vld [vmem:[%s0] sm:$0xff]
    %v56 = vld [vmem:[%s0 + $0x8] sm:$0xff]
    %v57 = vld [vmem:[%s0 + $0x10] sm:$0xff]
    %v58 = vld [vmem:[%s0 + $0x18] sm:$0xff]
    %v59 = vld [vmem:[%s0 + $0x20] sm:$0xff]
    %v60 = vld [vmem:[%s0 + $0x28] sm:$0xff]
    %v61 = vld [vmem:[%s0 + $0x30] sm:$0xff]
    %v62 = vld [vmem:[%s0 + $0x38] sm:$0xff]
    %v63 = vld [vmem:[%s0 + $0x40] sm:$0xff]
    %v64 = vld [vmem:[%s0 + $0x48] sm:$0xff]
    %v65 = vld [vmem:[%s0 + $0x50] sm:$0xff]
    %v66 = vld [vmem:[%s0 + $0x58] sm:$0xff]
    %v67 = vld [vmem:[%s0 + $0x60] sm:$0xff]
    %v68 = vld [vmem:[%s0 + $0x68] sm:$0xff]
    %v69 = vld [vmem:[%s0 + $0x70] sm:$0xff]
    %v70 = vld [vmem:[%s0 + $0x78] sm:$0xff]
    %v71 = vld [vmem:[%s1] sm:$0xff]
    %v72 = vld [vmem:[%s1 + $0x8] sm:$0x7]
    %v73 = vld [vmem:[%s2] sm:$0x1]
    %v75 = vlaneseq
    %v76 = vshrl.u32 %v75, 7
    %v77 = vsub.s32 0, %v76
    %v78 = vrot.slane %v73, %v77
    %vm80 = vcmask 89088
    %v82 = vsel %vm80, %v55, 0
    %v85 = vsel %vm80, %v56, 0
    %v88 = vsel %vm80, %v57, 0
    %v91 = vsel %vm80, %v58, 0
    %v94 = vsel %vm80, %v59, 0
    %v97 = vsel %vm80, %v60, 0
    %v100 = vsel %vm80, %v61, 0
    %v103 = vsel %vm80, %v62, 0
    %v106 = vsel %vm80, %v63, 0
    %v109 = vsel %vm80, %v64, 0
    %v112 = vsel %vm80, %v65, 0
    %v115 = vsel %vm80, %v66, 0
    %v118 = vsel %vm80, %v67, 0
    %v121 = vsel %vm80, %v68, 0
    %v124 = vsel %vm80, %v69, 0
    %v127 = vsel %vm80, %v70, 0
    %vm129 = vcmask 1042432
    %v131 = vsel %vm129, %v72, 0
    %133 = vmatprep.subr.mxu0 0.0
    %134 = vmatpush1.msra.mxu0 %v71
    %135 = vmatprep.subr.mxu0 0.0
    %136 = vmatpush1.msra.mxu0 %v131
    %137 = vmatprep.subr.mxu0 0.0
    %138 = vmatpush1.msra.mxu0 0.0
    %139 = vmatprep.subr.mxu0 0.0
    %140 = vmatpush1.msra.mxu0 0.0
    %141 = vmatprep.subr.mxu0 0.0
    %142 = vmatpush1.msra.mxu0 0.0
    %143 = vmatprep.subr.mxu0 0.0
    %144 = vmatpush1.msra.mxu0 0.0
    %145 = vmatprep.subr.mxu0 0.0
    %146 = vmatpush1.msra.mxu0 0.0
    %147 = vmatprep.subr.mxu0 0.0
    %148 = vmatpush1.msra.mxu0 0.0
    %149 = vmatprep.subr.mxu0 0.0
    %150 = vmatpush1.msra.mxu0 0.0
    %151 = vmatprep.subr.mxu0 0.0
    %152 = vmatpush1.msra.mxu0 0.0
    %153 = vmatprep.subr.mxu0 0.0
    %154 = vmatpush1.msra.mxu0 0.0
    %155 = vmatprep.subr.mxu0 0.0
    %156 = vmatpush1.msra.mxu0 0.0
    %157 = vmatprep.subr.mxu0 0.0
    %158 = vmatpush1.msra.mxu0 0.0
    %159 = vmatprep.subr.mxu0 0.0
    %160 = vmatpush1.msra.mxu0 0.0
    %161 = vmatprep.subr.mxu0 0.0
    %162 = vmatpush1.msra.mxu0 0.0
    %163 = vmatprep.subr.mxu0 0.0
    %164 = vmatpush1.msra.mxu0 0.0
    %165 = vmatprep.subr.mxu0 0.0
    %166 = vmatpush1.msra.mxu0 0.0
    %167 = vmatprep.subr.mxu0 0.0
    %168 = vmatpush1.msra.mxu0 0.0
    %169 = vmatprep.subr.mxu0 0.0
    %170 = vmatpush1.msra.mxu0 0.0
    %171 = vmatprep.subr.mxu0 0.0
    %172 = vmatpush1.msra.mxu0 0.0
    %173 = vmatprep.subr.mxu0 0.0
    %174 = vmatpush1.msra.mxu0 0.0
    %175 = vmatprep.subr.mxu0 0.0
    %176 = vmatpush1.msra.mxu0 0.0
    %177 = vmatprep.subr.mxu0 0.0
    %178 = vmatpush1.msra.mxu0 0.0
    %179 = vmatprep.subr.mxu0 0.0
    %180 = vmatpush1.msra.mxu0 0.0
    %181 = vmatprep.subr.mxu0 0.0
    %182 = vmatpush1.msra.mxu0 0.0
    %183 = vmatprep.subr.mxu0 0.0
    %184 = vmatpush1.msra.mxu0 0.0
    %185 = vmatprep.subr.mxu0 0.0
    %186 = vmatpush1.msra.mxu0 0.0
    %187 = vmatprep.subr.mxu0 0.0
    %188 = vmatpush1.msra.mxu0 0.0
    %189 = vmatprep.subr.mxu0 0.0
    %190 = vmatpush1.msra.mxu0 0.0
    %191 = vmatprep.subr.mxu0 0.0
    %192 = vmatpush1.msra.mxu0 0.0
    %193 = vmatprep.subr.mxu0 0.0
    %194 = vmatpush1.msra.mxu0 0.0
    %195 = vmatprep.subr.mxu0 0.0
    %196 = vmatpush1.msra.mxu0 0.0
    %197 = vmatprep.mubr.f32.mxu0 0.0
    %198 = vmatmul.mubr.f32.gmra.mrb[0].mxu0 %v82
    %v199 = vpop.f32.mrb[0].mxu0
    %v200 = vadd.f32 %v78, %v199
    %v201 = vpop.f32.mrb[0].mxu0
    %202 = vmatprep.mubr.f32.mxu0 0.0
    %203 = vmatmul.mubr.f32.gmra.mrb[0].mxu0 %v85
    %v204 = vpop.f32.mrb[0].mxu0
    %v205 = vadd.f32 %v78, %v204
    %v206 = vpop.f32.mrb[0].mxu0
    %207 = vmatprep.mubr.f32.mxu0 0.0
    %208 = vmatmul.mubr.f32.gmra.mrb[0].mxu0 %v88
    %v209 = vpop.f32.mrb[0].mxu0
    %v210 = vadd.f32 %v78, %v209
    %v211 = vpop.f32.mrb[0].mxu0
    %212 = vmatprep.mubr.f32.mxu0 0.0
    %213 = vmatmul.mubr.f32.gmra.mrb[0].mxu0 %v91
    %v214 = vpop.f32.mrb[0].mxu0
    %v215 = vadd.f32 %v78, %v214
    %v216 = vpop.f32.mrb[0].mxu0
    %217 = vmatprep.mubr.f32.mxu0 0.0
    %218 = vmatmul.mubr.f32.gmra.mrb[0].mxu0 %v94
    %v219 = vpop.f32.mrb[0].mxu0
    %v220 = vadd.f32 %v78, %v219
    %v221 = vpop.f32.mrb[0].mxu0
    %222 = vmatprep.mubr.f32.mxu0 0.0
    %223 = vmatmul.mubr.f32.gmra.mrb[0].mxu0 %v97
    %v224 = vpop.f32.mrb[0].mxu0
    %v225 = vadd.f32 %v78, %v224
    %v226 = vpop.f32.mrb[0].mxu0
    %227 = vmatprep.mubr.f32.mxu0 0.0
    %228 = vmatmul.mubr.f32.gmra.mrb[0].mxu0 %v100
    %v229 = vpop.f32.mrb[0].mxu0
    %v230 = vadd.f32 %v78, %v229
    %v231 = vpop.f32.mrb[0].mxu0
    %232 = vmatprep.mubr.f32.mxu0 0.0
    %233 = vmatmul.mubr.f32.gmra.mrb[0].mxu0 %v103
    %v234 = vpop.f32.mrb[0].mxu0
    %v235 = vadd.f32 %v78, %v234
    %v236 = vpop.f32.mrb[0].mxu0
    %237 = vmatprep.mubr.f32.mxu0 0.0
    %238 = vmatmul.mubr.f32.gmra.mrb[0].mxu0 %v106
    %v239 = vpop.f32.mrb[0].mxu0
    %v240 = vadd.f32 %v78, %v239
    %v241 = vpop.f32.mrb[0].mxu0
    %242 = vmatprep.mubr.f32.mxu0 0.0
    %243 = vmatmul.mubr.f32.gmra.mrb[0].mxu0 %v109
    %v244 = vpop.f32.mrb[0].mxu0
    %v245 = vadd.f32 %v78, %v244
    %v246 = vpop.f32.mrb[0].mxu0
    %247 = vmatprep.mubr.f32.mxu0 0.0
    %248 = vmatmul.mubr.f32.gmra.mrb[0].mxu0 %v112
    %v249 = vpop.f32.mrb[0].mxu0
    %v250 = vadd.f32 %v78, %v249
    %v251 = vpop.f32.mrb[0].mxu0
    %252 = vmatprep.mubr.f32.mxu0 0.0
    %253 = vmatmul.mubr.f32.gmra.mrb[0].mxu0 %v115
    %v254 = vpop.f32.mrb[0].mxu0
    %v255 = vadd.f32 %v78, %v254
    %v256 = vpop.f32.mrb[0].mxu0
    %257 = vmatprep.mubr.f32.mxu0 0.0
    %258 = vmatmul.mubr.f32.gmra.mrb[0].mxu0 %v118
    %v259 = vpop.f32.mrb[0].mxu0
    %v260 = vadd.f32 %v78, %v259
    %v261 = vpop.f32.mrb[0].mxu0
    %262 = vmatprep.mubr.f32.mxu0 0.0
    %263 = vmatmul.mubr.f32.gmra.mrb[0].mxu0 %v121
    %v264 = vpop.f32.mrb[0].mxu0
    %v265 = vadd.f32 %v78, %v264
    %v266 = vpop.f32.mrb[0].mxu0
    %267 = vmatprep.mubr.f32.mxu0 0.0
    %268 = vmatmul.mubr.f32.gmra.mrb[0].mxu0 %v124
    %v269 = vpop.f32.mrb[0].mxu0
    %v270 = vadd.f32 %v78, %v269
    %v271 = vpop.f32.mrb[0].mxu0
    %272 = vmatprep.mubr.f32.mxu0 0.0
    %273 = vmatmul.mubr.f32.gmra.mrb[0].mxu0 %v127
    %v274 = vpop.f32.mrb[0].mxu0
    %v275 = vadd.f32 %v78, %v274
    %v276 = vpop.f32.mrb[0].mxu0
    %277 = vdwg.mxu0
    %v278 = vmax.f32 %v200, 0.0
    %v279 = vmax.f32 %v205, 0.0
    %v280 = vmax.f32 %v210, 0.0
    %v281 = vmax.f32 %v215, 0.0
    %v282 = vmax.f32 %v220, 0.0
    %v283 = vmax.f32 %v225, 0.0
    %v284 = vmax.f32 %v230, 0.0
    %v285 = vmax.f32 %v235, 0.0
    %v286 = vmax.f32 %v240, 0.0
    %v287 = vmax.f32 %v245, 0.0
    %v288 = vmax.f32 %v250, 0.0
    %v289 = vmax.f32 %v255, 0.0
    %v290 = vmax.f32 %v260, 0.0
    %v291 = vmax.f32 %v265, 0.0
    %v292 = vmax.f32 %v270, 0.0
    %v293 = vmax.f32 %v275, 0.0
    %v294 = vld [vmem:[%s3] sm:$0xff]
    %v295 = vld [vmem:[%s3 + $0x8] sm:$0xff]
    %v296 = vld [vmem:[%s3 + $0x10] sm:$0xff]
    %v297 = vld [vmem:[%s3 + $0x18] sm:$0xff]
    %v298 = vld [vmem:[%s4] sm:$0x1]
    %v300 = vlaneseq
    %v301 = vshrl.u32 %v300, 7
    %v302 = vsub.s32 0, %v301
    %v303 = vrot.slane %v298, %v302
    %vm305 = vcmask 261120
    %v307 = vsel %vm305, %v278, 0
    %v310 = vsel %vm305, %v279, 0
    %v313 = vsel %vm305, %v280, 0
    %v316 = vsel %vm305, %v281, 0
    %v319 = vsel %vm305, %v282, 0
    %v322 = vsel %vm305, %v283, 0
    %v325 = vsel %vm305, %v284, 0
    %v328 = vsel %vm305, %v285, 0
    %v331 = vsel %vm305, %v286, 0
    %v334 = vsel %vm305, %v287, 0
    %v337 = vsel %vm305, %v288, 0
    %v340 = vsel %vm305, %v289, 0
    %v343 = vsel %vm305, %v290, 0
    %v346 = vsel %vm305, %v291, 0
    %v349 = vsel %vm305, %v292, 0
    %v352 = vsel %vm305, %v293, 0
    %354 = vmatprep.subr.mxu0 0.0
    %355 = vmatpush1.msra.mxu0 %v294
    %356 = vmatprep.subr.mxu0 0.0
    %357 = vmatpush1.msra.mxu0 %v295
    %358 = vmatprep.subr.mxu0 0.0
    %359 = vmatpush1.msra.mxu0 %v296
    %360 = vmatprep.subr.mxu0 0.0
    %361 = vmatpush1.msra.mxu0 %v297
    %362 = vmatprep.subr.mxu0 0.0
    %363 = vmatpush1.msra.mxu0 0.0
    %364 = vmatprep.subr.mxu0 0.0
    %365 = vmatpush1.msra.mxu0 0.0
    %366 = vmatprep.subr.mxu0 0.0
    %367 = vmatpush1.msra.mxu0 0.0
    %368 = vmatprep.subr.mxu0 0.0
    %369 = vmatpush1.msra.mxu0 0.0
    %370 = vmatprep.subr.mxu0 0.0
    %371 = vmatpush1.msra.mxu0 0.0
    %372 = vmatprep.subr.mxu0 0.0
    %373 = vmatpush1.msra.mxu0 0.0
    %374 = vmatprep.subr.mxu0 0.0
    %375 = vmatpush1.msra.mxu0 0.0
    %376 = vmatprep.subr.mxu0 0.0
    %377 = vmatpush1.msra.mxu0 0.0
    %378 = vmatprep.subr.mxu0 0.0
    %379 = vmatpush1.msra.mxu0 0.0
    %380 = vmatprep.subr.mxu0 0.0
    %381 = vmatpush1.msra.mxu0 0.0
    %382 = vmatprep.subr.mxu0 0.0
    %383 = vmatpush1.msra.mxu0 0.0
    %384 = vmatprep.subr.mxu0 0.0
    %385 = vmatpush1.msra.mxu0 0.0
    %386 = vmatprep.subr.mxu0 0.0
    %387 = vmatpush1.msra.mxu0 0.0
    %388 = vmatprep.subr.mxu0 0.0
    %389 = vmatpush1.msra.mxu0 0.0
    %390 = vmatprep.subr.mxu0 0.0
    %391 = vmatpush1.msra.mxu0 0.0
    %392 = vmatprep.subr.mxu0 0.0
    %393 = vmatpush1.msra.mxu0 0.0
    %394 = vmatprep.subr.mxu0 0.0
    %395 = vmatpush1.msra.mxu0 0.0
    %396 = vmatprep.subr.mxu0 0.0
    %397 = vmatpush1.msra.mxu0 0.0
    %398 = vmatprep.subr.mxu0 0.0
    %399 = vmatpush1.msra.mxu0 0.0
    %400 = vmatprep.subr.mxu0 0.0
    %401 = vmatpush1.msra.mxu0 0.0
    %402 = vmatprep.subr.mxu0 0.0
    %403 = vmatpush1.msra.mxu0 0.0
    %404 = vmatprep.subr.mxu0 0.0
    %405 = vmatpush1.msra.mxu0 0.0
    %406 = vmatprep.subr.mxu0 0.0
    %407 = vmatpush1.msra.mxu0 0.0
    %408 = vmatprep.subr.mxu0 0.0
    %409 = vmatpush1.msra.mxu0 0.0
    %410 = vmatprep.subr.mxu0 0.0
    %411 = vmatpush1.msra.mxu0 0.0
    %412 = vmatprep.subr.mxu0 0.0
    %413 = vmatpush1.msra.mxu0 0.0
    %414 = vmatprep.subr.mxu0 0.0
    %415 = vmatpush1.msra.mxu0 0.0
    %416 = vmatprep.subr.mxu0 0.0
    %417 = vmatpush1.msra.mxu0 0.0
    %418 = vmatprep.mubr.f32.mxu0 0.0
    %419 = vmatmul.mubr.f32.gmra.mrb[0].mxu0 %v307
    %v420 = vpop.f32.mrb[0].mxu0
    %v421 = vadd.f32 %v303, %v420
    %v422 = vpop.f32.mrb[0].mxu0
    %423 = vmatprep.mubr.f32.mxu0 0.0
    %424 = vmatmul.mubr.f32.gmra.mrb[0].mxu0 %v310
    %v425 = vpop.f32.mrb[0].mxu0
    %v426 = vadd.f32 %v303, %v425
    %v427 = vpop.f32.mrb[0].mxu0
    %428 = vmatprep.mubr.f32.mxu0 0.0
    %429 = vmatmul.mubr.f32.gmra.mrb[0].mxu0 %v313
    %v430 = vpop.f32.mrb[0].mxu0
    %v431 = vadd.f32 %v303, %v430
    %v432 = vpop.f32.mrb[0].mxu0
    %433 = vmatprep.mubr.f32.mxu0 0.0
    %434 = vmatmul.mubr.f32.gmra.mrb[0].mxu0 %v316
    %v435 = vpop.f32.mrb[0].mxu0
    %v436 = vadd.f32 %v303, %v435
    %v437 = vpop.f32.mrb[0].mxu0
    %438 = vmatprep.mubr.f32.mxu0 0.0
    %439 = vmatmul.mubr.f32.gmra.mrb[0].mxu0 %v319
    %v440 = vpop.f32.mrb[0].mxu0
    %v441 = vadd.f32 %v303, %v440
    %v442 = vpop.f32.mrb[0].mxu0
    %443 = vmatprep.mubr.f32.mxu0 0.0
    %444 = vmatmul.mubr.f32.gmra.mrb[0].mxu0 %v322
    %v445 = vpop.f32.mrb[0].mxu0
    %v446 = vadd.f32 %v303, %v445
    %v447 = vpop.f32.mrb[0].mxu0
    %448 = vmatprep.mubr.f32.mxu0 0.0
    %449 = vmatmul.mubr.f32.gmra.mrb[0].mxu0 %v325
    %v450 = vpop.f32.mrb[0].mxu0
    %v451 = vadd.f32 %v303, %v450
    %v452 = vpop.f32.mrb[0].mxu0
    %453 = vmatprep.mubr.f32.mxu0 0.0
    %454 = vmatmul.mubr.f32.gmra.mrb[0].mxu0 %v328
    %v455 = vpop.f32.mrb[0].mxu0
    %v456 = vadd.f32 %v303, %v455
    %v457 = vpop.f32.mrb[0].mxu0
    %458 = vmatprep.mubr.f32.mxu0 0.0
    %459 = vmatmul.mubr.f32.gmra.mrb[0].mxu0 %v331
    %v460 = vpop.f32.mrb[0].mxu0
    %v461 = vadd.f32 %v303, %v460
    %v462 = vpop.f32.mrb[0].mxu0
    %463 = vmatprep.mubr.f32.mxu0 0.0
    %464 = vmatmul.mubr.f32.gmra.mrb[0].mxu0 %v334
    %v465 = vpop.f32.mrb[0].mxu0
    %v466 = vadd.f32 %v303, %v465
    %v467 = vpop.f32.mrb[0].mxu0
    %468 = vmatprep.mubr.f32.mxu0 0.0
    %469 = vmatmul.mubr.f32.gmra.mrb[0].mxu0 %v337
    %v470 = vpop.f32.mrb[0].mxu0
    %v471 = vadd.f32 %v303, %v470
    %v472 = vpop.f32.mrb[0].mxu0
    %473 = vmatprep.mubr.f32.mxu0 0.0
    %474 = vmatmul.mubr.f32.gmra.mrb[0].mxu0 %v340
    %v475 = vpop.f32.mrb[0].mxu0
    %v476 = vadd.f32 %v303, %v475
    %v477 = vpop.f32.mrb[0].mxu0
    %478 = vmatprep.mubr.f32.mxu0 0.0
    %479 = vmatmul.mubr.f32.gmra.mrb[0].mxu0 %v343
    %v480 = vpop.f32.mrb[0].mxu0
    %v481 = vadd.f32 %v303, %v480
    %v482 = vpop.f32.mrb[0].mxu0
    %483 = vmatprep.mubr.f32.mxu0 0.0
    %484 = vmatmul.mubr.f32.gmra.mrb[0].mxu0 %v346
    %v485 = vpop.f32.mrb[0].mxu0
    %v486 = vadd.f32 %v303, %v485
    %v487 = vpop.f32.mrb[0].mxu0
    %488 = vmatprep.mubr.f32.mxu0 0.0
    %489 = vmatmul.mubr.f32.gmra.mrb[0].mxu0 %v349
    %v490 = vpop.f32.mrb[0].mxu0
    %v491 = vadd.f32 %v303, %v490
    %v492 = vpop.f32.mrb[0].mxu0
    %493 = vmatprep.mubr.f32.mxu0 0.0
    %494 = vmatmul.mubr.f32.gmra.mrb[0].mxu0 %v352
    %v495 = vpop.f32.mrb[0].mxu0
    %v496 = vadd.f32 %v303, %v495
    %v497 = vpop.f32.mrb[0].mxu0
    %498 = vdwg.mxu0
    %vm499 = vcmask 523520
    %v500 = vsel %vm499, %v421, 0.0
    %v501 = vsel %vm499, %v426, 0.0
    %v502 = vadd.f32 %v500, %v501
    %v503 = vrot.slane %v502, 4
    %v504 = vadd.f32 %v502, %v503
    %v505 = vrot.slane %v504, 2
    %v506 = vadd.f32 %v504, %v505
    %v507 = vrot.slane %v506, 1
    %v508 = vadd.f32 %v506, %v507
    %v509 = vsel %vm499, %v431, 0.0
    %v510 = vsel %vm499, %v436, 0.0
    %v511 = vadd.f32 %v509, %v510
    %v512 = vrot.slane %v511, 4
    %v513 = vadd.f32 %v511, %v512
    %v514 = vrot.slane %v513, 2
    %v515 = vadd.f32 %v513, %v514
    %v516 = vrot.slane %v515, 1
    %v517 = vadd.f32 %v515, %v516
    %v518 = vsel %vm499, %v441, 0.0
    %v519 = vsel %vm499, %v446, 0.0
    %v520 = vadd.f32 %v518, %v519
    %v521 = vrot.slane %v520, 4
    %v522 = vadd.f32 %v520, %v521
    %v523 = vrot.slane %v522, 2
    %v524 = vadd.f32 %v522, %v523
    %v525 = vrot.slane %v524, 1
    %v526 = vadd.f32 %v524, %v525
    %v527 = vsel %vm499, %v451, 0.0
    %v528 = vsel %vm499, %v456, 0.0
    %v529 = vadd.f32 %v527, %v528
    %v530 = vrot.slane %v529, 4
    %v531 = vadd.f32 %v529, %v530
    %v532 = vrot.slane %v531, 2
    %v533 = vadd.f32 %v531, %v532
    %v534 = vrot.slane %v533, 1
    %v535 = vadd.f32 %v533, %v534
    %v536 = vsel %vm499, %v461, 0.0
    %v537 = vsel %vm499, %v466, 0.0
    %v538 = vadd.f32 %v536, %v537
    %v539 = vrot.slane %v538, 4
    %v540 = vadd.f32 %v538, %v539
    %v541 = vrot.slane %v540, 2
    %v542 = vadd.f32 %v540, %v541
    %v543 = vrot.slane %v542, 1
    %v544 = vadd.f32 %v542, %v543
    %v545 = vsel %vm499, %v471, 0.0
    %v546 = vsel %vm499, %v476, 0.0
    %v547 = vadd.f32 %v545, %v546
    %v548 = vrot.slane %v547, 4
    %v549 = vadd.f32 %v547, %v548
    %v550 = vrot.slane %v549, 2
    %v551 = vadd.f32 %v549, %v550
    %v552 = vrot.slane %v551, 1
    %v553 = vadd.f32 %v551, %v552
    %v554 = vsel %vm499, %v481, 0.0
    %v555 = vsel %vm499, %v486, 0.0
    %v556 = vadd.f32 %v554, %v555
    %v557 = vrot.slane %v556, 4
    %v558 = vadd.f32 %v556, %v557
    %v559 = vrot.slane %v558, 2
    %v560 = vadd.f32 %v558, %v559
    %v561 = vrot.slane %v560, 1
    %v562 = vadd.f32 %v560, %v561
    %v563 = vsel %vm499, %v491, 0.0
    %v564 = vsel %vm499, %v496, 0.0
    %v565 = vadd.f32 %v563, %v564
    %v566 = vrot.slane %v565, 4
    %v567 = vadd.f32 %v565, %v566
    %v568 = vrot.slane %v567, 2
    %v569 = vadd.f32 %v567, %v568
    %v570 = vrot.slane %v569, 1
    %v571 = vadd.f32 %v569, %v570
    %v572 = vrcp.pop 16.0
    %v573 = vmul.f32 %v508, %v572
    %v574 = vmul.f32 %v517, %v572
    %v575 = vmul.f32 %v526, %v572
    %v576 = vmul.f32 %v535, %v572
    %v577 = vmul.f32 %v544, %v572
    %v578 = vmul.f32 %v553, %v572
    %v579 = vmul.f32 %v562, %v572
    %v580 = vmul.f32 %v571, %v572
    %v581 = vsel %vm305, %v421, 0.0
    %v582 = vsel %vm305, %v426, 0.0
    %v583 = vadd.f32 %v581, %v582
    %v584 = vrot.slane %v583, 4
    %v585 = vadd.f32 %v583, %v584
    %v586 = vrot.slane %v585, 2
    %v587 = vadd.f32 %v585, %v586
    %v588 = vrot.slane %v587, 1
    %v589 = vadd.f32 %v587, %v588
    %v590 = vsel %vm305, %v431, 0.0
    %v591 = vsel %vm305, %v436, 0.0
    %v592 = vadd.f32 %v590, %v591
    %v593 = vrot.slane %v592, 4
    %v594 = vadd.f32 %v592, %v593
    %v595 = vrot.slane %v594, 2
    %v596 = vadd.f32 %v594, %v595
    %v597 = vrot.slane %v596, 1
    %v598 = vadd.f32 %v596, %v597
    %v599 = vsel %vm305, %v441, 0.0
    %v600 = vsel %vm305, %v446, 0.0
    %v601 = vadd.f32 %v599, %v600
    %v602 = vrot.slane %v601, 4
    %v603 = vadd.f32 %v601, %v602
    %v604 = vrot.slane %v603, 2
    %v605 = vadd.f32 %v603, %v604
    %v606 = vrot.slane %v605, 1
    %v607 = vadd.f32 %v605, %v606
    %v608 = vsel %vm305, %v451, 0.0
    %v609 = vsel %vm305, %v456, 0.0
    %v610 = vadd.f32 %v608, %v609
    %v611 = vrot.slane %v610, 4
    %v612 = vadd.f32 %v610, %v611
    %v613 = vrot.slane %v612, 2
    %v614 = vadd.f32 %v612, %v613
    %v615 = vrot.slane %v614, 1
    %v616 = vadd.f32 %v614, %v615
    %v617 = vsel %vm305, %v461, 0.0
    %v618 = vsel %vm305, %v466, 0.0
    %v619 = vadd.f32 %v617, %v618
    %v620 = vrot.slane %v619, 4
    %v621 = vadd.f32 %v619, %v620
    %v622 = vrot.slane %v621, 2
    %v623 = vadd.f32 %v621, %v622
    %v624 = vrot.slane %v623, 1
    %v625 = vadd.f32 %v623, %v624
    %v626 = vsel %vm305, %v471, 0.0
    %v627 = vsel %vm305, %v476, 0.0
    %v628 = vadd.f32 %v626, %v627
    %v629 = vrot.slane %v628, 4
    %v630 = vadd.f32 %v628, %v629
    %v631 = vrot.slane %v630, 2
    %v632 = vadd.f32 %v630, %v631
    %v633 = vrot.slane %v632, 1
    %v634 = vadd.f32 %v632, %v633
    %v635 = vsel %vm305, %v481, 0.0
    %v636 = vsel %vm305, %v486, 0.0
    %v637 = vadd.f32 %v635, %v636
    %v638 = vrot.slane %v637, 4
    %v639 = vadd.f32 %v637, %v638
    %v640 = vrot.slane %v639, 2
    %v641 = vadd.f32 %v639, %v640
    %v642 = vrot.slane %v641, 1
    %v643 = vadd.f32 %v641, %v642
    %v644 = vsel %vm305, %v491, 0.0
    %v645 = vsel %vm305, %v496, 0.0
    %v646 = vadd.f32 %v644, %v645
    %v647 = vrot.slane %v646, 4
    %v648 = vadd.f32 %v646, %v647
    %v649 = vrot.slane %v648, 2
    %v650 = vadd.f32 %v648, %v649
    %v651 = vrot.slane %v650, 1
    %v652 = vadd.f32 %v650, %v651
    %v653 = vmul.f32 %v589, %v572
    %v654 = vmul.f32 %v598, %v572
    %v655 = vmul.f32 %v607, %v572
    %v656 = vmul.f32 %v616, %v572
    %v657 = vmul.f32 %v625, %v572
    %v658 = vmul.f32 %v634, %v572
    %v659 = vmul.f32 %v643, %v572
    %v660 = vmul.f32 %v652, %v572
    %v661 = vmul.f32 %v573, %v573
    %v662 = vmul.f32 %v574, %v574
    %v663 = vmul.f32 %v575, %v575
    %v664 = vmul.f32 %v576, %v576
    %v665 = vmul.f32 %v577, %v577
    %v666 = vmul.f32 %v578, %v578
    %v667 = vmul.f32 %v579, %v579
    %v668 = vmul.f32 %v580, %v580
    %vm677 = vcmask 1041409
    %v678 = vsel %vm677, %v662, %v661
    %vm679 = vcmask 1042434
    %v680 = vsel %vm679, %v663, %v678
    %vm681 = vcmask 1043459
    %v682 = vsel %vm681, %v664, %v680
    %vm683 = vcmask 1044484
    %v684 = vsel %vm683, %v665, %v682
    %vm685 = vcmask 1045509
    %v686 = vsel %vm685, %v666, %v684
    %vm687 = vcmask 1046534
    %v688 = vsel %vm687, %v667, %v686
    %vm689 = vcmask 1047559
    %v690 = vsel %vm689, %v668, %v688
    %691 = vrot.lane.b32.xlu0 %v690, 96
    %v692 = vpop.permute.xlu0 %691
    %v694 = vsel %vm305, %v692, 0.0
    %695 = vadd.xlane.f32.xlu0 %v694
    %v696 = vpop.xlane.xlu0 %695
    %v697 = vmax.f32 %v696, 1e-24
    %v698 = vrsqrt.pop %v697
    %v700 = vrot.slane %v698, 1
    %v701 = vrot.slane %v698, 2
    %v702 = vrot.slane %v698, 3
    %v703 = vrot.slane %v698, 4
    %v704 = vrot.slane %v698, 5
    %v705 = vrot.slane %v698, 6
    %v706 = vrot.slane %v698, 7
    %v715 = vmul.f32 %v573, %v698
    %v716 = vmul.f32 %v574, %v700
    %v717 = vmul.f32 %v575, %v701
    %v718 = vmul.f32 %v576, %v702
    %v719 = vmul.f32 %v577, %v703
    %v720 = vmul.f32 %v578, %v704
    %v721 = vmul.f32 %v579, %v705
    %v722 = vmul.f32 %v580, %v706
    %v723 = vmul.f32 %v421, %v421
    %v724 = vmul.f32 %v426, %v426
    %v725 = vmul.f32 %v431, %v431
    %v726 = vmul.f32 %v436, %v436
    %v727 = vmul.f32 %v441, %v441
    %v728 = vmul.f32 %v446, %v446
    %v729 = vmul.f32 %v451, %v451
    %v730 = vmul.f32 %v456, %v456
    %v731 = vmul.f32 %v461, %v461
    %v732 = vmul.f32 %v466, %v466
    %v733 = vmul.f32 %v471, %v471
    %v734 = vmul.f32 %v476, %v476
    %v735 = vmul.f32 %v481, %v481
    %v736 = vmul.f32 %v486, %v486
    %v737 = vmul.f32 %v491, %v491
    %v738 = vmul.f32 %v496, %v496
    %755 = vrot.lane.b32.xlu0 %v723, 96
    %v756 = vpop.permute.xlu0 %755
    %757 = vrot.lane.b32.xlu0 %v724, 96
    %v758 = vpop.permute.xlu0 %757
    %759 = vrot.lane.b32.xlu0 %v725, 96
    %v760 = vpop.permute.xlu0 %759
    %761 = vrot.lane.b32.xlu0 %v726, 96
    %v762 = vpop.permute.xlu0 %761
    %763 = vrot.lane.b32.xlu0 %v727, 96
    %v764 = vpop.permute.xlu0 %763
    %765 = vrot.lane.b32.xlu0 %v728, 96
    %v766 = vpop.permute.xlu0 %765
    %767 = vrot.lane.b32.xlu0 %v729, 96
    %v768 = vpop.permute.xlu0 %767
    %769 = vrot.lane.b32.xlu0 %v730, 96
    %v770 = vpop.permute.xlu0 %769
    %771 = vrot.lane.b32.xlu0 %v731, 96
    %v772 = vpop.permute.xlu0 %771
    %773 = vrot.lane.b32.xlu0 %v732, 96
    %v774 = vpop.permute.xlu0 %773
    %775 = vrot.lane.b32.xlu0 %v733, 96
    %v776 = vpop.permute.xlu0 %775
    %777 = vrot.lane.b32.xlu0 %v734, 96
    %v778 = vpop.permute.xlu0 %777
    %779 = vrot.lane.b32.xlu0 %v735, 96
    %v780 = vpop.permute.xlu0 %779
    %781 = vrot.lane.b32.xlu0 %v736, 96
    %v782 = vpop.permute.xlu0 %781
    %783 = vrot.lane.b32.xlu0 %v737, 96
    %v784 = vpop.permute.xlu0 %783
    %785 = vrot.lane.b32.xlu0 %v738, 96
    %v786 = vpop.permute.xlu0 %785
    %v803 = vsel %vm305, %v756, 0.0
    %804 = vadd.xlane.f32.xlu0 %v803
    %v805 = vpop.xlane.xlu0 %804
    %v806 = vsel %vm305, %v758, 0.0
    %807 = vadd.xlane.f32.xlu0 %v806
    %v808 = vpop.xlane.xlu0 %807
    %v809 = vsel %vm305, %v760, 0.0
    %810 = vadd.xlane.f32.xlu0 %v809
    %v811 = vpop.xlane.xlu0 %810
    %v812 = vsel %vm305, %v762, 0.0
    %813 = vadd.xlane.f32.xlu0 %v812
    %v814 = vpop.xlane.xlu0 %813
    %v815 = vsel %vm305, %v764, 0.0
    %816 = vadd.xlane.f32.xlu0 %v815
    %v817 = vpop.xlane.xlu0 %816
    %v818 = vsel %vm305, %v766, 0.0
    %819 = vadd.xlane.f32.xlu0 %v818
    %v820 = vpop.xlane.xlu0 %819
    %v821 = vsel %vm305, %v768, 0.0
    %822 = vadd.xlane.f32.xlu0 %v821
    %v823 = vpop.xlane.xlu0 %822
    %v824 = vsel %vm305, %v770, 0.0
    %825 = vadd.xlane.f32.xlu0 %v824
    %v826 = vpop.xlane.xlu0 %825
    %v827 = vsel %vm305, %v772, 0.0
    %828 = vadd.xlane.f32.xlu0 %v827
    %v829 = vpop.xlane.xlu0 %828
    %v830 = vsel %vm305, %v774, 0.0
    %831 = vadd.xlane.f32.xlu0 %v830
    %v832 = vpop.xlane.xlu0 %831
    %v833 = vsel %vm305, %v776, 0.0
    %834 = vadd.xlane.f32.xlu0 %v833
    %v835 = vpop.xlane.xlu0 %834
    %v836 = vsel %vm305, %v778, 0.0
    %837 = vadd.xlane.f32.xlu0 %v836
    %v838 = vpop.xlane.xlu0 %837
    %v839 = vsel %vm305, %v780, 0.0
    %840 = vadd.xlane.f32.xlu0 %v839
    %v841 = vpop.xlane.xlu0 %840
    %v842 = vsel %vm305, %v782, 0.0
    %843 = vadd.xlane.f32.xlu0 %v842
    %v844 = vpop.xlane.xlu0 %843
    %v845 = vsel %vm305, %v784, 0.0
    %846 = vadd.xlane.f32.xlu0 %v845
    %v847 = vpop.xlane.xlu0 %846
    %v848 = vsel %vm305, %v786, 0.0
    %849 = vadd.xlane.f32.xlu0 %v848
    %v850 = vpop.xlane.xlu0 %849
    %v851 = vmax.f32 %v805, 1e-24
    %v852 = vmax.f32 %v808, 1e-24
    %v853 = vmax.f32 %v811, 1e-24
    %v854 = vmax.f32 %v814, 1e-24
    %v855 = vmax.f32 %v817, 1e-24
    %v856 = vmax.f32 %v820, 1e-24
    %v857 = vmax.f32 %v823, 1e-24
    %v858 = vmax.f32 %v826, 1e-24
    %v859 = vmax.f32 %v829, 1e-24
    %v860 = vmax.f32 %v832, 1e-24
    %v861 = vmax.f32 %v835, 1e-24
    %v862 = vmax.f32 %v838, 1e-24
    %v863 = vmax.f32 %v841, 1e-24
    %v864 = vmax.f32 %v844, 1e-24
    %v865 = vmax.f32 %v847, 1e-24
    %v866 = vmax.f32 %v850, 1e-24
    %v867 = vrsqrt.pop %v851
    %v868 = vrsqrt.pop %v852
    %v869 = vrsqrt.pop %v853
    %v870 = vrsqrt.pop %v854
    %v871 = vrsqrt.pop %v855
    %v872 = vrsqrt.pop %v856
    %v873 = vrsqrt.pop %v857
    %v874 = vrsqrt.pop %v858
    %v875 = vrsqrt.pop %v859
    %v876 = vrsqrt.pop %v860
    %v877 = vrsqrt.pop %v861
    %v878 = vrsqrt.pop %v862
    %v879 = vrsqrt.pop %v863
    %v880 = vrsqrt.pop %v864
    %v881 = vrsqrt.pop %v865
    %v882 = vrsqrt.pop %v866
    %v883 = vmul.f32 %v421, %v867
    %v884 = vmul.f32 %v426, %v868
    %v885 = vmul.f32 %v431, %v869
    %v886 = vmul.f32 %v436, %v870
    %v887 = vmul.f32 %v441, %v871
    %v888 = vmul.f32 %v446, %v872
    %v889 = vmul.f32 %v451, %v873
    %v890 = vmul.f32 %v456, %v874
    %v891 = vmul.f32 %v461, %v875
    %v892 = vmul.f32 %v466, %v876
    %v893 = vmul.f32 %v471, %v877
    %v894 = vmul.f32 %v476, %v878
    %v895 = vmul.f32 %v481, %v879
    %v896 = vmul.f32 %v486, %v880
    %v897 = vmul.f32 %v491, %v881
    %v898 = vmul.f32 %v496, %v882
    %s899 = sld [smem:[#allocation2]]
    %s900 = sld [smem:[#allocation2 + $0x1]]
    %v901 = vlaneseq
    %v902 = vshrl.u32 %v901, 7
    %v903 = vsub.s32 0, %v902
    %v904 = vrot.slane %v715, %v903
    %v905 = vlaneseq
    %v906 = vshrl.u32 %v905, 7
    %v907 = vsub.s32 0, %v906
    %v908 = vrot.slane %v716, %v907
    %v909 = vlaneseq
    %v910 = vshrl.u32 %v909, 7
    %v911 = vsub.s32 0, %v910
    %v912 = vrot.slane %v717, %v911
    %v913 = vlaneseq
    %v914 = vshrl.u32 %v913, 7
    %v915 = vsub.s32 0, %v914
    %v916 = vrot.slane %v718, %v915
    %v917 = vlaneseq
    %v918 = vshrl.u32 %v917, 7
    %v919 = vsub.s32 0, %v918
    %v920 = vrot.slane %v719, %v919
    %v921 = vlaneseq
    %v922 = vshrl.u32 %v921, 7
    %v923 = vsub.s32 0, %v922
    %v924 = vrot.slane %v720, %v923
    %v925 = vlaneseq
    %v926 = vshrl.u32 %v925, 7
    %v927 = vsub.s32 0, %v926
    %v928 = vrot.slane %v721, %v927
    %v929 = vlaneseq
    %v930 = vshrl.u32 %v929, 7
    %v931 = vsub.s32 0, %v930
    %v932 = vrot.slane %v722, %v931
    %v933 = vmul.f32 %v883, %v904
    %v934 = vmul.f32 %v884, %v904
    %v935 = vmul.f32 %v885, %v908
    %v936 = vmul.f32 %v886, %v908
    %v937 = vmul.f32 %v887, %v912
    %v938 = vmul.f32 %v888, %v912
    %v939 = vmul.f32 %v889, %v916
    %v940 = vmul.f32 %v890, %v916
    %v941 = vmul.f32 %v891, %v920
    %v942 = vmul.f32 %v892, %v920
    %v943 = vmul.f32 %v893, %v924
    %v944 = vmul.f32 %v894, %v924
    %v945 = vmul.f32 %v895, %v928
    %v946 = vmul.f32 %v896, %v928
    %v947 = vmul.f32 %v897, %v932
    %v948 = vmul.f32 %v898, %v932
    %965 = vrot.lane.b32.xlu0 %v933, 96
    %v966 = vpop.permute.xlu0 %965
    %967 = vrot.lane.b32.xlu0 %v934, 96
    %v968 = vpop.permute.xlu0 %967
    %969 = vrot.lane.b32.xlu0 %v935, 96
    %v970 = vpop.permute.xlu0 %969
    %971 = vrot.lane.b32.xlu0 %v936, 96
    %v972 = vpop.permute.xlu0 %971
    %973 = vrot.lane.b32.xlu0 %v937, 96
    %v974 = vpop.permute.xlu0 %973
    %975 = vrot.lane.b32.xlu0 %v938, 96
    %v976 = vpop.permute.xlu0 %975
    %977 = vrot.lane.b32.xlu0 %v939, 96
    %v978 = vpop.permute.xlu0 %977
    %979 = vrot.lane.b32.xlu0 %v940, 96
    %v980 = vpop.permute.xlu0 %979
    %981 = vrot.lane.b32.xlu0 %v941, 96
    %v982 = vpop.permute.xlu0 %981
    %983 = vrot.lane.b32.xlu0 %v942, 96
    %v984 = vpop.permute.xlu0 %983
    %985 = vrot.lane.b32.xlu0 %v943, 96
    %v986 = vpop.permute.xlu0 %985
    %987 = vrot.lane.b32.xlu0 %v944, 96
    %v988 = vpop.permute.xlu0 %987
    %989 = vrot.lane.b32.xlu0 %v945, 96
    %v990 = vpop.permute.xlu0 %989
    %991 = vrot.lane.b32.xlu0 %v946, 96
    %v992 = vpop.permute.xlu0 %991
    %993 = vrot.lane.b32.xlu0 %v947, 96
    %v994 = vpop.permute.xlu0 %993
    %995 = vrot.lane.b32.xlu0 %v948, 96
    %v996 = vpop.permute.xlu0 %995
    %v1013 = vsel %vm305, %v966, 0.0
    %1014 = vadd.xlane.f32.xlu0 %v1013
    %v1015 = vpop.xlane.xlu0 %1014
    %v1016 = vsel %vm305, %v968, 0.0
    %1017 = vadd.xlane.f32.xlu0 %v1016
    %v1018 = vpop.xlane.xlu0 %1017
    %v1019 = vsel %vm305, %v970, 0.0
    %1020 = vadd.xlane.f32.xlu0 %v1019
    %v1021 = vpop.xlane.xlu0 %1020
    %v1022 = vsel %vm305, %v972, 0.0
    %1023 = vadd.xlane.f32.xlu0 %v1022
    %v1024 = vpop.xlane.xlu0 %1023
    %v1025 = vsel %vm305, %v974, 0.0
    %1026 = vadd.xlane.f32.xlu0 %v1025
    %v1027 = vpop.xlane.xlu0 %1026
    %v1028 = vsel %vm305, %v976, 0.0
    %1029 = vadd.xlane.f32.xlu0 %v1028
    %v1030 = vpop.xlane.xlu0 %1029
    %v1031 = vsel %vm305, %v978, 0.0
    %1032 = vadd.xlane.f32.xlu0 %v1031
    %v1033 = vpop.xlane.xlu0 %1032
    %v1034 = vsel %vm305, %v980, 0.0
    %1035 = vadd.xlane.f32.xlu0 %v1034
    %v1036 = vpop.xlane.xlu0 %1035
    %v1037 = vsel %vm305, %v982, 0.0
    %1038 = vadd.xlane.f32.xlu0 %v1037
    %v1039 = vpop.xlane.xlu0 %1038
    %v1040 = vsel %vm305, %v984, 0.0
    %1041 = vadd.xlane.f32.xlu0 %v1040
    %v1042 = vpop.xlane.xlu0 %1041
    %v1043 = vsel %vm305, %v986, 0.0
    %1044 = vadd.xlane.f32.xlu0 %v1043
    %v1045 = vpop.xlane.xlu0 %1044
    %v1046 = vsel %vm305, %v988, 0.0
    %1047 = vadd.xlane.f32.xlu0 %v1046
    %v1048 = vpop.xlane.xlu0 %1047
    %v1049 = vsel %vm305, %v990, 0.0
    %1050 = vadd.xlane.f32.xlu0 %v1049
    %v1051 = vpop.xlane.xlu0 %1050
    %v1052 = vsel %vm305, %v992, 0.0
    %1053 = vadd.xlane.f32.xlu0 %v1052
    %v1054 = vpop.xlane.xlu0 %1053
    %v1055 = vsel %vm305, %v994, 0.0
    %1056 = vadd.xlane.f32.xlu0 %v1055
    %v1057 = vpop.xlane.xlu0 %1056
    %v1058 = vsel %vm305, %v996, 0.0
    %1059 = vadd.xlane.f32.xlu0 %v1058
    %v1060 = vpop.xlane.xlu0 %1059
    %v1061 = vstv %s899
    %v1062 = vmul.f32 %v1061, %v1015
    %v1063 = vmul.f32 %v1061, %v1018
    %v1064 = vmul.f32 %v1061, %v1021
    %v1065 = vmul.f32 %v1061, %v1024
    %v1066 = vmul.f32 %v1061, %v1027
    %v1067 = vmul.f32 %v1061, %v1030
    %v1068 = vmul.f32 %v1061, %v1033
    %v1069 = vmul.f32 %v1061, %v1036
    %v1070 = vmul.f32 %v1061, %v1039
    %v1071 = vmul.f32 %v1061, %v1042
    %v1072 = vmul.f32 %v1061, %v1045
    %v1073 = vmul.f32 %v1061, %v1048
    %v1074 = vmul.f32 %v1061, %v1051
    %v1075 = vmul.f32 %v1061, %v1054
    %v1076 = vmul.f32 %v1061, %v1057
    %v1077 = vmul.f32 %v1061, %v1060
    %v1078 = vstv %s900
    %v1079 = vadd.f32 %v1078, %v1062
    %v1080 = vadd.f32 %v1078, %v1063
    %v1081 = vadd.f32 %v1078, %v1064
    %v1082 = vadd.f32 %v1078, %v1065
    %v1083 = vadd.f32 %v1078, %v1066
    %v1084 = vadd.f32 %v1078, %v1067
    %v1085 = vadd.f32 %v1078, %v1068
    %v1086 = vadd.f32 %v1078, %v1069
    %v1087 = vadd.f32 %v1078, %v1070
    %v1088 = vadd.f32 %v1078, %v1071
    %v1089 = vadd.f32 %v1078, %v1072
    %v1090 = vadd.f32 %v1078, %v1073
    %v1091 = vadd.f32 %v1078, %v1074
    %v1092 = vadd.f32 %v1078, %v1075
    %v1093 = vadd.f32 %v1078, %v1076
    %v1094 = vadd.f32 %v1078, %v1077
    %v1095 = vxor.u32 %v1079, 2147483648
    %v1096 = vxor.u32 %v1080, 2147483648
    %v1097 = vxor.u32 %v1081, 2147483648
    %v1098 = vxor.u32 %v1082, 2147483648
    %v1099 = vxor.u32 %v1083, 2147483648
    %v1100 = vxor.u32 %v1084, 2147483648
    %v1101 = vxor.u32 %v1085, 2147483648
    %v1102 = vxor.u32 %v1086, 2147483648
    %v1103 = vxor.u32 %v1087, 2147483648
    %v1104 = vxor.u32 %v1088, 2147483648
    %v1105 = vxor.u32 %v1089, 2147483648
    %v1106 = vxor.u32 %v1090, 2147483648
    %v1107 = vxor.u32 %v1091, 2147483648
    %v1108 = vxor.u32 %v1092, 2147483648
    %v1109 = vxor.u32 %v1093, 2147483648
    %v1110 = vxor.u32 %v1094, 2147483648
    %v1111 = vmul.f32 %v1095, 1.442695
    %v1112 = vpow.pop %v1111
    %v1113 = vmul.f32 %v1096, 1.442695
    %v1114 = vpow.pop %v1113
    %v1115 = vmul.f32 %v1097, 1.442695
    %v1116 = vpow.pop %v1115
    %v1117 = vmul.f32 %v1098, 1.442695
    %v1118 = vpow.pop %v1117
    %v1119 = vmul.f32 %v1099, 1.442695
    %v1120 = vpow.pop %v1119
    %v1121 = vmul.f32 %v1100, 1.442695
    %v1122 = vpow.pop %v1121
    %v1123 = vmul.f32 %v1101, 1.442695
    %v1124 = vpow.pop %v1123
    %v1125 = vmul.f32 %v1102, 1.442695
    %v1126 = vpow.pop %v1125
    %v1127 = vmul.f32 %v1103, 1.442695
    %v1128 = vpow.pop %v1127
    %v1129 = vmul.f32 %v1104, 1.442695
    %v1130 = vpow.pop %v1129
    %v1131 = vmul.f32 %v1105, 1.442695
    %v1132 = vpow.pop %v1131
    %v1133 = vmul.f32 %v1106, 1.442695
    %v1134 = vpow.pop %v1133
    %v1135 = vmul.f32 %v1107, 1.442695
    %v1136 = vpow.pop %v1135
    %v1137 = vmul.f32 %v1108, 1.442695
    %v1138 = vpow.pop %v1137
    %v1139 = vmul.f32 %v1109, 1.442695
    %v1140 = vpow.pop %v1139
    %v1141 = vmul.f32 %v1110, 1.442695
    %v1142 = vpow.pop %v1141
    %v1143 = vadd.f32 %v1112, 1.0
    %v1144 = vadd.f32 %v1114, 1.0
    %v1145 = vadd.f32 %v1116, 1.0
    %v1146 = vadd.f32 %v1118, 1.0
    %v1147 = vadd.f32 %v1120, 1.0
    %v1148 = vadd.f32 %v1122, 1.0
    %v1149 = vadd.f32 %v1124, 1.0
    %v1150 = vadd.f32 %v1126, 1.0
    %v1151 = vadd.f32 %v1128, 1.0
    %v1152 = vadd.f32 %v1130, 1.0
    %v1153 = vadd.f32 %v1132, 1.0
    %v1154 = vadd.f32 %v1134, 1.0
    %v1155 = vadd.f32 %v1136, 1.0
    %v1156 = vadd.f32 %v1138, 1.0
    %v1157 = vadd.f32 %v1140, 1.0
    %v1158 = vadd.f32 %v1142, 1.0
    %v1159 = vrcp.pop %v1143
    %v1160 = vmul.f32 1.0, %v1159
    %v1161 = vrcp.pop %v1144
    %v1162 = vmul.f32 1.0, %v1161
    %v1163 = vrcp.pop %v1145
    %v1164 = vmul.f32 1.0, %v1163
    %v1165 = vrcp.pop %v1146
    %v1166 = vmul.f32 1.0, %v1165
    %v1167 = vrcp.pop %v1147
    %v1168 = vmul.f32 1.0, %v1167
    %v1169 = vrcp.pop %v1148
    %v1170 = vmul.f32 1.0, %v1169
    %v1171 = vrcp.pop %v1149
    %v1172 = vmul.f32 1.0, %v1171
    %v1173 = vrcp.pop %v1150
    %v1174 = vmul.f32 1.0, %v1173
    %v1175 = vrcp.pop %v1151
    %v1176 = vmul.f32 1.0, %v1175
    %v1177 = vrcp.pop %v1152
    %v1178 = vmul.f32 1.0, %v1177
    %v1179 = vrcp.pop %v1153
    %v1180 = vmul.f32 1.0, %v1179
    %v1181 = vrcp.pop %v1154
    %v1182 = vmul.f32 1.0, %v1181
    %v1183 = vrcp.pop %v1155
    %v1184 = vmul.f32 1.0, %v1183
    %v1185 = vrcp.pop %v1156
    %v1186 = vmul.f32 1.0, %v1185
    %v1187 = vrcp.pop %v1157
    %v1188 = vmul.f32 1.0, %v1187
    %v1189 = vrcp.pop %v1158
    %v1190 = vmul.f32 1.0, %v1189
    %v1191 = vmul.f32 %v421, %v1160
    %v1192 = vmul.f32 %v426, %v1162
    %v1193 = vmul.f32 %v431, %v1164
    %v1194 = vmul.f32 %v436, %v1166
    %v1195 = vmul.f32 %v441, %v1168
    %v1196 = vmul.f32 %v446, %v1170
    %v1197 = vmul.f32 %v451, %v1172
    %v1198 = vmul.f32 %v456, %v1174
    %v1199 = vmul.f32 %v461, %v1176
    %v1200 = vmul.f32 %v466, %v1178
    %v1201 = vmul.f32 %v471, %v1180
    %v1202 = vmul.f32 %v476, %v1182
    %v1203 = vmul.f32 %v481, %v1184
    %v1204 = vmul.f32 %v486, %v1186
    %v1205 = vmul.f32 %v491, %v1188
    %v1206 = vmul.f32 %v496, %v1190
    %v1207 = vsel %vm305, %v1191, 0.0
    %v1208 = vsel %vm305, %v1192, 0.0
    %v1209 = vadd.f32 %v1207, %v1208
    %v1210 = vrot.slane %v1209, 4
    %v1211 = vadd.f32 %v1209, %v1210
    %v1212 = vrot.slane %v1211, 2
    %v1213 = vadd.f32 %v1211, %v1212
    %v1214 = vrot.slane %v1213, 1
    %v1215 = vadd.f32 %v1213, %v1214
    %v1216 = vsel %vm305, %v1193, 0.0
    %v1217 = vsel %vm305, %v1194, 0.0
    %v1218 = vadd.f32 %v1216, %v1217
    %v1219 = vrot.slane %v1218, 4
    %v1220 = vadd.f32 %v1218, %v1219
    %v1221 = vrot.slane %v1220, 2
    %v1222 = vadd.f32 %v1220, %v1221
    %v1223 = vrot.slane %v1222, 1
    %v1224 = vadd.f32 %v1222, %v1223
    %v1225 = vsel %vm305, %v1195, 0.0
    %v1226 = vsel %vm305, %v1196, 0.0
    %v1227 = vadd.f32 %v1225, %v1226
    %v1228 = vrot.slane %v1227, 4
    %v1229 = vadd.f32 %v1227, %v1228
    %v1230 = vrot.slane %v1229, 2
    %v1231 = vadd.f32 %v1229, %v1230
    %v1232 = vrot.slane %v1231, 1
    %v1233 = vadd.f32 %v1231, %v1232
    %v1234 = vsel %vm305, %v1197, 0.0
    %v1235 = vsel %vm305, %v1198, 0.0
    %v1236 = vadd.f32 %v1234, %v1235
    %v1237 = vrot.slane %v1236, 4
    %v1238 = vadd.f32 %v1236, %v1237
    %v1239 = vrot.slane %v1238, 2
    %v1240 = vadd.f32 %v1238, %v1239
    %v1241 = vrot.slane %v1240, 1
    %v1242 = vadd.f32 %v1240, %v1241
    %v1243 = vsel %vm305, %v1199, 0.0
    %v1244 = vsel %vm305, %v1200, 0.0
    %v1245 = vadd.f32 %v1243, %v1244
    %v1246 = vrot.slane %v1245, 4
    %v1247 = vadd.f32 %v1245, %v1246
    %v1248 = vrot.slane %v1247, 2
    %v1249 = vadd.f32 %v1247, %v1248
    %v1250 = vrot.slane %v1249, 1
    %v1251 = vadd.f32 %v1249, %v1250
    %v1252 = vsel %vm305, %v1201, 0.0
    %v1253 = vsel %vm305, %v1202, 0.0
    %v1254 = vadd.f32 %v1252, %v1253
    %v1255 = vrot.slane %v1254, 4
    %v1256 = vadd.f32 %v1254, %v1255
    %v1257 = vrot.slane %v1256, 2
    %v1258 = vadd.f32 %v1256, %v1257
    %v1259 = vrot.slane %v1258, 1
    %v1260 = vadd.f32 %v1258, %v1259
    %v1261 = vsel %vm305, %v1203, 0.0
    %v1262 = vsel %vm305, %v1204, 0.0
    %v1263 = vadd.f32 %v1261, %v1262
    %v1264 = vrot.slane %v1263, 4
    %v1265 = vadd.f32 %v1263, %v1264
    %v1266 = vrot.slane %v1265, 2
    %v1267 = vadd.f32 %v1265, %v1266
    %v1268 = vrot.slane %v1267, 1
    %v1269 = vadd.f32 %v1267, %v1268
    %v1270 = vsel %vm305, %v1205, 0.0
    %v1271 = vsel %vm305, %v1206, 0.0
    %v1272 = vadd.f32 %v1270, %v1271
    %v1273 = vrot.slane %v1272, 4
    %v1274 = vadd.f32 %v1272, %v1273
    %v1275 = vrot.slane %v1274, 2
    %v1276 = vadd.f32 %v1274, %v1275
    %v1277 = vrot.slane %v1276, 1
    %v1278 = vadd.f32 %v1276, %v1277
    %v1279 = vadd.f32 %v1160, %v1162
    %v1280 = vrot.slane %v1279, 4
    %v1281 = vadd.f32 %v1279, %v1280
    %v1282 = vrot.slane %v1281, 2
    %v1283 = vadd.f32 %v1281, %v1282
    %v1284 = vrot.slane %v1283, 1
    %v1285 = vadd.f32 %v1283, %v1284
    %v1286 = vadd.f32 %v1164, %v1166
    %v1287 = vrot.slane %v1286, 4
    %v1288 = vadd.f32 %v1286, %v1287
    %v1289 = vrot.slane %v1288, 2
    %v1290 = vadd.f32 %v1288, %v1289
    %v1291 = vrot.slane %v1290, 1
    %v1292 = vadd.f32 %v1290, %v1291
    %v1293 = vadd.f32 %v1168, %v1170
    %v1294 = vrot.slane %v1293, 4
    %v1295 = vadd.f32 %v1293, %v1294
    %v1296 = vrot.slane %v1295, 2
    %v1297 = vadd.f32 %v1295, %v1296
    %v1298 = vrot.slane %v1297, 1
    %v1299 = vadd.f32 %v1297, %v1298
    %v1300 = vadd.f32 %v1172, %v1174
    %v1301 = vrot.slane %v1300, 4
    %v1302 = vadd.f32 %v1300, %v1301
    %v1303 = vrot.slane %v1302, 2
    %v1304 = vadd.f32 %v1302, %v1303
    %v1305 = vrot.slane %v1304, 1
    %v1306 = vadd.f32 %v1304, %v1305
    %v1307 = vadd.f32 %v1176, %v1178
    %v1308 = vrot.slane %v1307, 4
    %v1309 = vadd.f32 %v1307, %v1308
    %v1310 = vrot.slane %v1309, 2
    %v1311 = vadd.f32 %v1309, %v1310
    %v1312 = vrot.slane %v1311, 1
    %v1313 = vadd.f32 %v1311, %v1312
    %v1314 = vadd.f32 %v1180, %v1182
    %v1315 = vrot.slane %v1314, 4
    %v1316 = vadd.f32 %v1314, %v1315
    %v1317 = vrot.slane %v1316, 2
    %v1318 = vadd.f32 %v1316, %v1317
    %v1319 = vrot.slane %v1318, 1
    %v1320 = vadd.f32 %v1318, %v1319
    %v1321 = vadd.f32 %v1184, %v1186
    %v1322 = vrot.slane %v1321, 4
    %v1323 = vadd.f32 %v1321, %v1322
    %v1324 = vrot.slane %v1323, 2
    %v1325 = vadd.f32 %v1323, %v1324
    %v1326 = vrot.slane %v1325, 1
    %v1327 = vadd.f32 %v1325, %v1326
    %v1328 = vadd.f32 %v1188, %v1190
    %v1329 = vrot.slane %v1328, 4
    %v1330 = vadd.f32 %v1328, %v1329
    %v1331 = vrot.slane %v1330, 2
    %v1332 = vadd.f32 %v1330, %v1331
    %v1333 = vrot.slane %v1332, 1
    %v1334 = vadd.f32 %v1332, %v1333
    %v1335 = vadd.f32 %v1285, 1.0
    %v1336 = vadd.f32 %v1292, 1.0
    %v1337 = vadd.f32 %v1299, 1.0
    %v1338 = vadd.f32 %v1306, 1.0
    %v1339 = vadd.f32 %v1313, 1.0
    %v1340 = vadd.f32 %v1320, 1.0
    %v1341 = vadd.f32 %v1327, 1.0
    %v1342 = vadd.f32 %v1334, 1.0
    %v1343 = vadd.f32 %v1215, %v653
    %v1344 = vadd.f32 %v1224, %v654
    %v1345 = vadd.f32 %v1233, %v655
    %v1346 = vadd.f32 %v1242, %v656
    %v1347 = vadd.f32 %v1251, %v657
    %v1348 = vadd.f32 %v1260, %v658
    %v1349 = vadd.f32 %v1269, %v659
    %v1350 = vadd.f32 %v1278, %v660
    %v1351 = vrcp.pop %v1335
    %v1352 = vrcp.pop %v1336
    %v1353 = vrcp.pop %v1337
    %v1354 = vrcp.pop %v1338
    %v1355 = vrcp.pop %v1339
    %v1356 = vrcp.pop %v1340
    %v1357 = vrcp.pop %v1341
    %v1358 = vrcp.pop %v1342
    %v1359 = vmul.f32 %v1343, %v1351
    %v1360 = vmul.f32 %v1344, %v1352
    %v1361 = vmul.f32 %v1345, %v1353
    %v1362 = vmul.f32 %v1346, %v1354
    %v1363 = vmul.f32 %v1347, %v1355
    %v1364 = vmul.f32 %v1348, %v1356
    %v1365 = vmul.f32 %v1349, %v1357
    %v1366 = vmul.f32 %v1350, %v1358
    %v1367 = vld [vmem:[%s5] sm:$0xff]
    %v1368 = vld [vmem:[%s5 + $0x8] sm:$0xff]
    %v1369 = vld [vmem:[%s5 + $0x10] sm:$0xff]
    %v1370 = vld [vmem:[%s5 + $0x18] sm:$0xff]
    %v1379 = vsel %vm677, %v1360, %v1359
    %v1380 = vsel %vm679, %v1361, %v1379
    %v1381 = vsel %vm681, %v1362, %v1380
    %v1382 = vsel %vm683, %v1363, %v1381
    %v1383 = vsel %vm685, %v1364, %v1382
    %v1384 = vsel %vm687, %v1365, %v1383
    %v1385 = vsel %vm689, %v1366, %v1384
    %v1386 = vsel %vm305, %v1385, 0
    %1388 = vmatprep.subr.mxu0 0.0
    %1389 = vmatpush1.msra.mxu0 %v1367
    %1390 = vmatprep.subr.mxu0 0.0
    %1391 = vmatpush1.msra.mxu0 %v1368
    %1392 = vmatprep.subr.mxu0 0.0
    %1393 = vmatpush1.msra.mxu0 %v1369
    %1394 = vmatprep.subr.mxu0 0.0
    %1395 = vmatpush1.msra.mxu0 %v1370
    %1396 = vmatprep.subr.mxu0 0.0
    %1397 = vmatpush1.msra.mxu0 0.0
    %1398 = vmatprep.subr.mxu0 0.0
    %1399 = vmatpush1.msra.mxu0 0.0
    %1400 = vmatprep.subr.mxu0 0.0
    %1401 = vmatpush1.msra.mxu0 0.0
    %1402 = vmatprep.subr.mxu0 0.0
    %1403 = vmatpush1.msra.mxu0 0.0
    %1404 = vmatprep.subr.mxu0 0.0
    %1405 = vmatpush1.msra.mxu0 0.0
    %1406 = vmatprep.subr.mxu0 0.0
    %1407 = vmatpush1.msra.mxu0 0.0
    %1408 = vmatprep.subr.mxu0 0.0
    %1409 = vmatpush1.msra.mxu0 0.0
    %1410 = vmatprep.subr.mxu0 0.0
    %1411 = vmatpush1.msra.mxu0 0.0
    %1412 = vmatprep.subr.mxu0 0.0
    %1413 = vmatpush1.msra.mxu0 0.0
    %1414 = vmatprep.subr.mxu0 0.0
    %1415 = vmatpush1.msra.mxu0 0.0
    %1416 = vmatprep.subr.mxu0 0.0
    %1417 = vmatpush1.msra.mxu0 0.0
    %1418 = vmatprep.subr.mxu0 0.0
    %1419 = vmatpush1.msra.mxu0 0.0
    %1420 = vmatprep.subr.mxu0 0.0
    %1421 = vmatpush1.msra.mxu0 0.0
    %1422 = vmatprep.subr.mxu0 0.0
    %1423 = vmatpush1.msra.mxu0 0.0
    %1424 = vmatprep.subr.mxu0 0.0
    %1425 = vmatpush1.msra.mxu0 0.0
    %1426 = vmatprep.subr.mxu0 0.0
    %1427 = vmatpush1.msra.mxu0 0.0
    %1428 = vmatprep.subr.mxu0 0.0
    %1429 = vmatpush1.msra.mxu0 0.0
    %1430 = vmatprep.subr.mxu0 0.0
    %1431 = vmatpush1.msra.mxu0 0.0
    %1432 = vmatprep.subr.mxu0 0.0
    %1433 = vmatpush1.msra.mxu0 0.0
    %1434 = vmatprep.subr.mxu0 0.0
    %1435 = vmatpush1.msra.mxu0 0.0
    %1436 = vmatprep.subr.mxu0 0.0
    %1437 = vmatpush1.msra.mxu0 0.0
    %1438 = vmatprep.subr.mxu0 0.0
    %1439 = vmatpush1.msra.mxu0 0.0
    %1440 = vmatprep.subr.mxu0 0.0
    %1441 = vmatpush1.msra.mxu0 0.0
    %1442 = vmatprep.subr.mxu0 0.0
    %1443 = vmatpush1.msra.mxu0 0.0
    %1444 = vmatprep.subr.mxu0 0.0
    %1445 = vmatpush1.msra.mxu0 0.0
    %1446 = vmatprep.subr.mxu0 0.0
    %1447 = vmatpush1.msra.mxu0 0.0
    %1448 = vmatprep.subr.mxu0 0.0
    %1449 = vmatpush1.msra.mxu0 0.0
    %1450 = vmatprep.subr.mxu0 0.0
    %1451 = vmatpush1.msra.mxu0 0.0
    %1452 = vmatprep.mubr.f32.mxu0 0.0
    %1453 = vmatmul.mubr.f32.gmra.mrb[0].mxu0 %v1386
    %v1454 = vpop.f32.mrb[0].mxu0
    %v1455 = vadd.f32 0.0, %v1454
    %v1456 = vpop.f32.mrb[0].mxu0
    %1457 = vdwg.mxu0
    %v1459 = vcombine.high %v1455, %v1455
    %v1461 = vunpack.c.l.s4 1966171168
    %v1462 = vunpack.c.0.s8 %v1461
    %v1463 = vlaneseq
    %v1464 = vshrl.u32 %v1463, 7
    %v1465 = vsub.s32 %v1462, %v1464
    %v1466 = vrot.slane %v1455, %v1465
    %v1468 = vunpack.c.l.s4 1966171168
    %v1469 = vunpack.c.0.s8 %v1468
    %v1470 = vlaneseq
    %v1471 = vshrl.u32 %v1470, 7
    %v1472 = vsub.s32 %v1469, %v1471
    %v1473 = vrot.slane %v1459, %v1472
    %v1474 = vcombine.high %v1466, %v1466
    %v1475 = vcombine.high %v1473, %v1473
    %v1477 = vunpack.c.l.s4 1966171168
    %v1478 = vunpack.c.0.s8 %v1477
    %v1479 = vlaneseq
    %v1480 = vshrl.u32 %v1479, 7
    %v1481 = vsub.s32 %v1478, %v1480
    %v1482 = vrot.slane %v1466, %v1481
    %v1484 = vunpack.c.l.s4 1966171168
    %v1485 = vunpack.c.0.s8 %v1484
    %v1486 = vlaneseq
    %v1487 = vshrl.u32 %v1486, 7
    %v1488 = vsub.s32 %v1485, %v1487
    %v1489 = vrot.slane %v1473, %v1488
    %v1491 = vunpack.c.l.s4 1966171168
    %v1492 = vunpack.c.0.s8 %v1491
    %v1493 = vlaneseq
    %v1494 = vshrl.u32 %v1493, 7
    %v1495 = vsub.s32 %v1492, %v1494
    %v1496 = vrot.slane %v1474, %v1495
    %v1498 = vunpack.c.l.s4 1966171168
    %v1499 = vunpack.c.0.s8 %v1498
    %v1500 = vlaneseq
    %v1501 = vshrl.u32 %v1500, 7
    %v1502 = vsub.s32 %v1499, %v1501
    %v1503 = vrot.slane %v1475, %v1502
    %v1504 = vcombine.high %v1482, %v1482
    %v1505 = vcombine.high %v1489, %v1489
    %v1506 = vcombine.high %v1496, %v1496
    %v1507 = vcombine.high %v1503, %v1503
    %v1508 = vlaneseq
    %v1509 = vshrl.u32 %v1508, 7
    %v1510 = vsub.s32 0, %v1509
    %v1511 = vrot.slane %v1482, %v1510
    %v1512 = vlaneseq
    %v1513 = vshrl.u32 %v1512, 7
    %v1514 = vsub.s32 0, %v1513
    %v1515 = vrot.slane %v1496, %v1514
    %v1516 = vlaneseq
    %v1517 = vshrl.u32 %v1516, 7
    %v1518 = vsub.s32 0, %v1517
    %v1519 = vrot.slane %v1504, %v1518
    %v1520 = vlaneseq
    %v1521 = vshrl.u32 %v1520, 7
    %v1522 = vsub.s32 0, %v1521
    %v1523 = vrot.slane %v1506, %v1522
    %v1524 = vlaneseq
    %v1525 = vshrl.u32 %v1524, 7
    %v1526 = vsub.s32 0, %v1525
    %v1527 = vrot.slane %v1489, %v1526
    %v1528 = vlaneseq
    %v1529 = vshrl.u32 %v1528, 7
    %v1530 = vsub.s32 0, %v1529
    %v1531 = vrot.slane %v1503, %v1530
    %v1532 = vlaneseq
    %v1533 = vshrl.u32 %v1532, 7
    %v1534 = vsub.s32 0, %v1533
    %v1535 = vrot.slane %v1505, %v1534
    %v1536 = vlaneseq
    %v1537 = vshrl.u32 %v1536, 7
    %v1538 = vsub.s32 0, %v1537
    %v1539 = vrot.slane %v1507, %v1538
    %v1548 = vmul.f32 %v1160, %v1511
    %v1549 = vmul.f32 %v1162, %v1511
    %v1550 = vmul.f32 %v1164, %v1515
    %v1551 = vmul.f32 %v1166, %v1515
    %v1552 = vmul.f32 %v1168, %v1519
    %v1553 = vmul.f32 %v1170, %v1519
    %v1554 = vmul.f32 %v1172, %v1523
    %v1555 = vmul.f32 %v1174, %v1523
    %v1556 = vmul.f32 %v1176, %v1527
    %v1557 = vmul.f32 %v1178, %v1527
    %v1558 = vmul.f32 %v1180, %v1531
    %v1559 = vmul.f32 %v1182, %v1531
    %v1560 = vmul.f32 %v1184, %v1535
    %v1561 = vmul.f32 %v1186, %v1535
    %v1562 = vmul.f32 %v1188, %v1539
    %v1563 = vmul.f32 %v1190, %v1539
    %v1564 = vadd.f32 %v278, %v1548
    %v1565 = vadd.f32 %v279, %v1549
    %v1566 = vadd.f32 %v280, %v1550
    %v1567 = vadd.f32 %v281, %v1551
    %v1568 = vadd.f32 %v282, %v1552
    %v1569 = vadd.f32 %v283, %v1553
    %v1570 = vadd.f32 %v284, %v1554
    %v1571 = vadd.f32 %v285, %v1555
    %v1572 = vadd.f32 %v286, %v1556
    %v1573 = vadd.f32 %v287, %v1557
    %v1574 = vadd.f32 %v288, %v1558
    %v1575 = vadd.f32 %v289, %v1559
    %v1576 = vadd.f32 %v290, %v1560
    %v1577 = vadd.f32 %v291, %v1561
    %v1578 = vadd.f32 %v292, %v1562
    %v1579 = vadd.f32 %v293, %v1563
    %v1580 = vld [vmem:[%s6] sm:$0x1]
    %v1582 = vlaneseq
    %v1583 = vshrl.u32 %v1582, 7
    %v1584 = vsub.s32 0, %v1583
    %v1585 = vrot.slane %v1580, %v1584
    %v1587 = vadd.f32 %v1564, %v1585
    %v1588 = vadd.f32 %v1565, %v1585
    %v1589 = vadd.f32 %v1566, %v1585
    %v1590 = vadd.f32 %v1567, %v1585
    %v1591 = vadd.f32 %v1568, %v1585
    %v1592 = vadd.f32 %v1569, %v1585
    %v1593 = vadd.f32 %v1570, %v1585
    %v1594 = vadd.f32 %v1571, %v1585
    %v1595 = vadd.f32 %v1572, %v1585
    %v1596 = vadd.f32 %v1573, %v1585
    %v1597 = vadd.f32 %v1574, %v1585
    %v1598 = vadd.f32 %v1575, %v1585
    %v1599 = vadd.f32 %v1576, %v1585
    %v1600 = vadd.f32 %v1577, %v1585
    %v1601 = vadd.f32 %v1578, %v1585
    %v1602 = vadd.f32 %v1579, %v1585
    %v1603 = vld [vmem:[%s8] sm:$0xff]
    %v1604 = vld [vmem:[%s8 + $0x8] sm:$0xff]
    %v1605 = vld [vmem:[%s8 + $0x10] sm:$0xff]
    %v1606 = vld [vmem:[%s8 + $0x18] sm:$0xff]
    %v1607 = vld [vmem:[%s9] sm:$0x1]
    %v1609 = vlaneseq
    %v1610 = vshrl.u32 %v1609, 7
    %v1611 = vsub.s32 0, %v1610
    %v1612 = vrot.slane %v1607, %v1611
    %v1615 = vsel %vm305, %v1587, 0
    %v1618 = vsel %vm305, %v1588, 0
    %v1621 = vsel %vm305, %v1589, 0
    %v1624 = vsel %vm305, %v1590, 0
    %v1627 = vsel %vm305, %v1591, 0
    %v1630 = vsel %vm305, %v1592, 0
    %v1633 = vsel %vm305, %v1593, 0
    %v1636 = vsel %vm305, %v1594, 0
    %v1639 = vsel %vm305, %v1595, 0
    %v1642 = vsel %vm305, %v1596, 0
    %v1645 = vsel %vm305, %v1597, 0
    %v1648 = vsel %vm305, %v1598, 0
    %v1651 = vsel %vm305, %v1599, 0
    %v1654 = vsel %vm305, %v1600, 0
    %v1657 = vsel %vm305, %v1601, 0
    %v1660 = vsel %vm305, %v1602, 0
    %1662 = vmatprep.subr.mxu0 0.0
    %1663 = vmatpush1.msra.mxu0 %v1603
    %1664 = vmatprep.subr.mxu0 0.0
    %1665 = vmatpush1.msra.mxu0 %v1604
    %1666 = vmatprep.subr.mxu0 0.0
    %1667 = vmatpush1.msra.mxu0 %v1605
    %1668 = vmatprep.subr.mxu0 0.0
    %1669 = vmatpush1.msra.mxu0 %v1606
    %1670 = vmatprep.subr.mxu0 0.0
    %1671 = vmatpush1.msra.mxu0 0.0
    %1672 = vmatprep.subr.mxu0 0.0
    %1673 = vmatpush1.msra.mxu0 0.0
    %1674 = vmatprep.subr.mxu0 0.0
    %1675 = vmatpush1.msra.mxu0 0.0
    %1676 = vmatprep.subr.mxu0 0.0
    %1677 = vmatpush1.msra.mxu0 0.0
    %1678 = vmatprep.subr.mxu0 0.0
    %1679 = vmatpush1.msra.mxu0 0.0
    %1680 = vmatprep.subr.mxu0 0.0
    %1681 = vmatpush1.msra.mxu0 0.0
    %1682 = vmatprep.subr.mxu0 0.0
    %1683 = vmatpush1.msra.mxu0 0.0
    %1684 = vmatprep.subr.mxu0 0.0
    %1685 = vmatpush1.msra.mxu0 0.0
    %1686 = vmatprep.subr.mxu0 0.0
    %1687 = vmatpush1.msra.mxu0 0.0
    %1688 = vmatprep.subr.mxu0 0.0
    %1689 = vmatpush1.msra.mxu0 0.0
    %1690 = vmatprep.subr.mxu0 0.0
    %1691 = vmatpush1.msra.mxu0 0.0
    %1692 = vmatprep.subr.mxu0 0.0
    %1693 = vmatpush1.msra.mxu0 0.0
    %1694 = vmatprep.subr.mxu0 0.0
    %1695 = vmatpush1.msra.mxu0 0.0
    %1696 = vmatprep.subr.mxu0 0.0
    %1697 = vmatpush1.msra.mxu0 0.0
    %1698 = vmatprep.subr.mxu0 0.0
    %1699 = vmatpush1.msra.mxu0 0.0
    %1700 = vmatprep.subr.mxu0 0.0
    %1701 = vmatpush1.msra.mxu0 0.0
    %1702 = vmatprep.subr.mxu0 0.0
    %1703 = vmatpush1.msra.mxu0 0.0
    %1704 = vmatprep.subr.mxu0 0.0
    %1705 = vmatpush1.msra.mxu0 0.0
    %1706 = vmatprep.subr.mxu0 0.0
    %1707 = vmatpush1.msra.mxu0 0.0
    %1708 = vmatprep.subr.mxu0 0.0
    %1709 = vmatpush1.msra.mxu0 0.0
    %1710 = vmatprep.subr.mxu0 0.0
    %1711 = vmatpush1.msra.mxu0 0.0
    %1712 = vmatprep.subr.mxu0 0.0
    %1713 = vmatpush1.msra.mxu0 0.0
    %1714 = vmatprep.subr.mxu0 0.0
    %1715 = vmatpush1.msra.mxu0 0.0
    %1716 = vmatprep.subr.mxu0 0.0
    %1717 = vmatpush1.msra.mxu0 0.0
    %1718 = vmatprep.subr.mxu0 0.0
    %1719 = vmatpush1.msra.mxu0 0.0
    %1720 = vmatprep.subr.mxu0 0.0
    %1721 = vmatpush1.msra.mxu0 0.0
    %1722 = vmatprep.subr.mxu0 0.0
    %1723 = vmatpush1.msra.mxu0 0.0
    %1724 = vmatprep.subr.mxu0 0.0
    %1725 = vmatpush1.msra.mxu0 0.0
    %1726 = vmatprep.mubr.f32.mxu0 0.0
    %1727 = vmatmul.mubr.f32.gmra.mrb[0].mxu0 %v1615
    %v1728 = vpop.f32.mrb[0].mxu0
    %v1729 = vadd.f32 %v1612, %v1728
    %v1730 = vpop.f32.mrb[0].mxu0
    %1731 = vmatprep.mubr.f32.mxu0 0.0
    %1732 = vmatmul.mubr.f32.gmra.mrb[0].mxu0 %v1618
    %v1733 = vpop.f32.mrb[0].mxu0
    %v1734 = vadd.f32 %v1612, %v1733
    %v1735 = vpop.f32.mrb[0].mxu0
    %1736 = vmatprep.mubr.f32.mxu0 0.0
    %1737 = vmatmul.mubr.f32.gmra.mrb[0].mxu0 %v1621
    %v1738 = vpop.f32.mrb[0].mxu0
    %v1739 = vadd.f32 %v1612, %v1738
    %v1740 = vpop.f32.mrb[0].mxu0
    %1741 = vmatprep.mubr.f32.mxu0 0.0
    %1742 = vmatmul.mubr.f32.gmra.mrb[0].mxu0 %v1624
    %v1743 = vpop.f32.mrb[0].mxu0
    %v1744 = vadd.f32 %v1612, %v1743
    %v1745 = vpop.f32.mrb[0].mxu0
    %1746 = vmatprep.mubr.f32.mxu0 0.0
    %1747 = vmatmul.mubr.f32.gmra.mrb[0].mxu0 %v1627
    %v1748 = vpop.f32.mrb[0].mxu0
    %v1749 = vadd.f32 %v1612, %v1748
    %v1750 = vpop.f32.mrb[0].mxu0
    %1751 = vmatprep.mubr.f32.mxu0 0.0
    %1752 = vmatmul.mubr.f32.gmra.mrb[0].mxu0 %v1630
    %v1753 = vpop.f32.mrb[0].mxu0
    %v1754 = vadd.f32 %v1612, %v1753
    %v1755 = vpop.f32.mrb[0].mxu0
    %1756 = vmatprep.mubr.f32.mxu0 0.0
    %1757 = vmatmul.mubr.f32.gmra.mrb[0].mxu0 %v1633
    %v1758 = vpop.f32.mrb[0].mxu0
    %v1759 = vadd.f32 %v1612, %v1758
    %v1760 = vpop.f32.mrb[0].mxu0
    %1761 = vmatprep.mubr.f32.mxu0 0.0
    %1762 = vmatmul.mubr.f32.gmra.mrb[0].mxu0 %v1636
    %v1763 = vpop.f32.mrb[0].mxu0
    %v1764 = vadd.f32 %v1612, %v1763
    %v1765 = vpop.f32.mrb[0].mxu0
    %1766 = vmatprep.mubr.f32.mxu0 0.0
    %1767 = vmatmul.mubr.f32.gmra.mrb[0].mxu0 %v1639
    %v1768 = vpop.f32.mrb[0].mxu0
    %v1769 = vadd.f32 %v1612, %v1768
    %v1770 = vpop.f32.mrb[0].mxu0
    %1771 = vmatprep.mubr.f32.mxu0 0.0
    %1772 = vmatmul.mubr.f32.gmra.mrb[0].mxu0 %v1642
    %v1773 = vpop.f32.mrb[0].mxu0
    %v1774 = vadd.f32 %v1612, %v1773
    %v1775 = vpop.f32.mrb[0].mxu0
    %1776 = vmatprep.mubr.f32.mxu0 0.0
    %1777 = vmatmul.mubr.f32.gmra.mrb[0].mxu0 %v1645
    %v1778 = vpop.f32.mrb[0].mxu0
    %v1779 = vadd.f32 %v1612, %v1778
    %v1780 = vpop.f32.mrb[0].mxu0
    %1781 = vmatprep.mubr.f32.mxu0 0.0
    %1782 = vmatmul.mubr.f32.gmra.mrb[0].mxu0 %v1648
    %v1783 = vpop.f32.mrb[0].mxu0
    %v1784 = vadd.f32 %v1612, %v1783
    %v1785 = vpop.f32.mrb[0].mxu0
    %1786 = vmatprep.mubr.f32.mxu0 0.0
    %1787 = vmatmul.mubr.f32.gmra.mrb[0].mxu0 %v1651
    %v1788 = vpop.f32.mrb[0].mxu0
    %v1789 = vadd.f32 %v1612, %v1788
    %v1790 = vpop.f32.mrb[0].mxu0
    %1791 = vmatprep.mubr.f32.mxu0 0.0
    %1792 = vmatmul.mubr.f32.gmra.mrb[0].mxu0 %v1654
    %v1793 = vpop.f32.mrb[0].mxu0
    %v1794 = vadd.f32 %v1612, %v1793
    %v1795 = vpop.f32.mrb[0].mxu0
    %1796 = vmatprep.mubr.f32.mxu0 0.0
    %1797 = vmatmul.mubr.f32.gmra.mrb[0].mxu0 %v1657
    %v1798 = vpop.f32.mrb[0].mxu0
    %v1799 = vadd.f32 %v1612, %v1798
    %v1800 = vpop.f32.mrb[0].mxu0
    %1801 = vmatprep.mubr.f32.mxu0 0.0
    %1802 = vmatmul.mubr.f32.gmra.mrb[0].mxu0 %v1660
    %v1803 = vpop.f32.mrb[0].mxu0
    %v1804 = vadd.f32 %v1612, %v1803
    %v1805 = vpop.f32.mrb[0].mxu0
    %1806 = vdwg.mxu0
    %v1807 = vmax.f32 %v1729, 0.0
    %v1808 = vmax.f32 %v1734, 0.0
    %v1809 = vmax.f32 %v1739, 0.0
    %v1810 = vmax.f32 %v1744, 0.0
    %v1811 = vmax.f32 %v1749, 0.0
    %v1812 = vmax.f32 %v1754, 0.0
    %v1813 = vmax.f32 %v1759, 0.0
    %v1814 = vmax.f32 %v1764, 0.0
    %v1815 = vmax.f32 %v1769, 0.0
    %v1816 = vmax.f32 %v1774, 0.0
    %v1817 = vmax.f32 %v1779, 0.0
    %v1818 = vmax.f32 %v1784, 0.0
    %v1819 = vmax.f32 %v1789, 0.0
    %v1820 = vmax.f32 %v1794, 0.0
    %v1821 = vmax.f32 %v1799, 0.0
    %v1822 = vmax.f32 %v1804, 0.0
    %v1823 = vld [vmem:[%s10] sm:$0xff]
    %v1824 = vld [vmem:[%s10 + $0x8] sm:$0xff]
    %v1825 = vld [vmem:[%s10 + $0x10] sm:$0xff]
    %v1826 = vld [vmem:[%s10 + $0x18] sm:$0xff]
    %v1827 = vld [vmem:[%s11] sm:$0x1]
    %v1829 = vlaneseq
    %v1830 = vshrl.u32 %v1829, 7
    %v1831 = vsub.s32 0, %v1830
    %v1832 = vrot.slane %v1827, %v1831
    %v1835 = vsel %vm305, %v1807, 0
    %v1838 = vsel %vm305, %v1808, 0
    %v1841 = vsel %vm305, %v1809, 0
    %v1844 = vsel %vm305, %v1810, 0
    %v1847 = vsel %vm305, %v1811, 0
    %v1850 = vsel %vm305, %v1812, 0
    %v1853 = vsel %vm305, %v1813, 0
    %v1856 = vsel %vm305, %v1814, 0
    %v1859 = vsel %vm305, %v1815, 0
    %v1862 = vsel %vm305, %v1816, 0
    %v1865 = vsel %vm305, %v1817, 0
    %v1868 = vsel %vm305, %v1818, 0
    %v1871 = vsel %vm305, %v1819, 0
    %v1874 = vsel %vm305, %v1820, 0
    %v1877 = vsel %vm305, %v1821, 0
    %v1880 = vsel %vm305, %v1822, 0
    %1882 = vmatprep.subr.mxu0 0.0
    %1883 = vmatpush1.msra.mxu0 %v1823
    %1884 = vmatprep.subr.mxu0 0.0
    %1885 = vmatpush1.msra.mxu0 %v1824
    %1886 = vmatprep.subr.mxu0 0.0
    %1887 = vmatpush1.msra.mxu0 %v1825
    %1888 = vmatprep.subr.mxu0 0.0
    %1889 = vmatpush1.msra.mxu0 %v1826
    %1890 = vmatprep.subr.mxu0 0.0
    %1891 = vmatpush1.msra.mxu0 0.0
    %1892 = vmatprep.subr.mxu0 0.0
    %1893 = vmatpush1.msra.mxu0 0.0
    %1894 = vmatprep.subr.mxu0 0.0
    %1895 = vmatpush1.msra.mxu0 0.0
    %1896 = vmatprep.subr.mxu0 0.0
    %1897 = vmatpush1.msra.mxu0 0.0
    %1898 = vmatprep.subr.mxu0 0.0
    %1899 = vmatpush1.msra.mxu0 0.0
    %1900 = vmatprep.subr.mxu0 0.0
    %1901 = vmatpush1.msra.mxu0 0.0
    %1902 = vmatprep.subr.mxu0 0.0
    %1903 = vmatpush1.msra.mxu0 0.0
    %1904 = vmatprep.subr.mxu0 0.0
    %1905 = vmatpush1.msra.mxu0 0.0
    %1906 = vmatprep.subr.mxu0 0.0
    %1907 = vmatpush1.msra.mxu0 0.0
    %1908 = vmatprep.subr.mxu0 0.0
    %1909 = vmatpush1.msra.mxu0 0.0
    %1910 = vmatprep.subr.mxu0 0.0
    %1911 = vmatpush1.msra.mxu0 0.0
    %1912 = vmatprep.subr.mxu0 0.0
    %1913 = vmatpush1.msra.mxu0 0.0
    %1914 = vmatprep.subr.mxu0 0.0
    %1915 = vmatpush1.msra.mxu0 0.0
    %1916 = vmatprep.subr.mxu0 0.0
    %1917 = vmatpush1.msra.mxu0 0.0
    %1918 = vmatprep.subr.mxu0 0.0
    %1919 = vmatpush1.msra.mxu0 0.0
    %1920 = vmatprep.subr.mxu0 0.0
    %1921 = vmatpush1.msra.mxu0 0.0
    %1922 = vmatprep.subr.mxu0 0.0
    %1923 = vmatpush1.msra.mxu0 0.0
    %1924 = vmatprep.subr.mxu0 0.0
    %1925 = vmatpush1.msra.mxu0 0.0
    %1926 = vmatprep.subr.mxu0 0.0
    %1927 = vmatpush1.msra.mxu0 0.0
    %1928 = vmatprep.subr.mxu0 0.0
    %1929 = vmatpush1.msra.mxu0 0.0
    %1930 = vmatprep.subr.mxu0 0.0
    %1931 = vmatpush1.msra.mxu0 0.0
    %1932 = vmatprep.subr.mxu0 0.0
    %1933 = vmatpush1.msra.mxu0 0.0
    %1934 = vmatprep.subr.mxu0 0.0
    %1935 = vmatpush1.msra.mxu0 0.0
    %1936 = vmatprep.subr.mxu0 0.0
    %1937 = vmatpush1.msra.mxu0 0.0
    %1938 = vmatprep.subr.mxu0 0.0
    %1939 = vmatpush1.msra.mxu0 0.0
    %1940 = vmatprep.subr.mxu0 0.0
    %1941 = vmatpush1.msra.mxu0 0.0
    %1942 = vmatprep.subr.mxu0 0.0
    %1943 = vmatpush1.msra.mxu0 0.0
    %1944 = vmatprep.subr.mxu0 0.0
    %1945 = vmatpush1.msra.mxu0 0.0
    %1946 = vmatprep.mubr.f32.mxu0 0.0
    %1947 = vmatmul.mubr.f32.gmra.mrb[0].mxu0 %v1835
    %v1948 = vpop.f32.mrb[0].mxu0
    %v1949 = vadd.f32 %v1832, %v1948
    %v1950 = vpop.f32.mrb[0].mxu0
    %1951 = vmatprep.mubr.f32.mxu0 0.0
    %1952 = vmatmul.mubr.f32.gmra.mrb[0].mxu0 %v1838
    %v1953 = vpop.f32.mrb[0].mxu0
    %v1954 = vadd.f32 %v1832, %v1953
    %v1955 = vpop.f32.mrb[0].mxu0
    %1956 = vmatprep.mubr.f32.mxu0 0.0
    %1957 = vmatmul.mubr.f32.gmra.mrb[0].mxu0 %v1841
    %v1958 = vpop.f32.mrb[0].mxu0
    %v1959 = vadd.f32 %v1832, %v1958
    %v1960 = vpop.f32.mrb[0].mxu0
    %1961 = vmatprep.mubr.f32.mxu0 0.0
    %1962 = vmatmul.mubr.f32.gmra.mrb[0].mxu0 %v1844
    %v1963 = vpop.f32.mrb[0].mxu0
    %v1964 = vadd.f32 %v1832, %v1963
    %v1965 = vpop.f32.mrb[0].mxu0
    %1966 = vmatprep.mubr.f32.mxu0 0.0
    %1967 = vmatmul.mubr.f32.gmra.mrb[0].mxu0 %v1847
    %v1968 = vpop.f32.mrb[0].mxu0
    %v1969 = vadd.f32 %v1832, %v1968
    %v1970 = vpop.f32.mrb[0].mxu0
    %1971 = vmatprep.mubr.f32.mxu0 0.0
    %1972 = vmatmul.mubr.f32.gmra.mrb[0].mxu0 %v1850
    %v1973 = vpop.f32.mrb[0].mxu0
    %v1974 = vadd.f32 %v1832, %v1973
    %v1975 = vpop.f32.mrb[0].mxu0
    %1976 = vmatprep.mubr.f32.mxu0 0.0
    %1977 = vmatmul.mubr.f32.gmra.mrb[0].mxu0 %v1853
    %v1978 = vpop.f32.mrb[0].mxu0
    %v1979 = vadd.f32 %v1832, %v1978
    %v1980 = vpop.f32.mrb[0].mxu0
    %1981 = vmatprep.mubr.f32.mxu0 0.0
    %1982 = vmatmul.mubr.f32.gmra.mrb[0].mxu0 %v1856
    %v1983 = vpop.f32.mrb[0].mxu0
    %v1984 = vadd.f32 %v1832, %v1983
    %v1985 = vpop.f32.mrb[0].mxu0
    %1986 = vmatprep.mubr.f32.mxu0 0.0
    %1987 = vmatmul.mubr.f32.gmra.mrb[0].mxu0 %v1859
    %v1988 = vpop.f32.mrb[0].mxu0
    %v1989 = vadd.f32 %v1832, %v1988
    %v1990 = vpop.f32.mrb[0].mxu0
    %1991 = vmatprep.mubr.f32.mxu0 0.0
    %1992 = vmatmul.mubr.f32.gmra.mrb[0].mxu0 %v1862
    %v1993 = vpop.f32.mrb[0].mxu0
    %v1994 = vadd.f32 %v1832, %v1993
    %v1995 = vpop.f32.mrb[0].mxu0
    %1996 = vmatprep.mubr.f32.mxu0 0.0
    %1997 = vmatmul.mubr.f32.gmra.mrb[0].mxu0 %v1865
    %v1998 = vpop.f32.mrb[0].mxu0
    %v1999 = vadd.f32 %v1832, %v1998
    %v2000 = vpop.f32.mrb[0].mxu0
    %2001 = vmatprep.mubr.f32.mxu0 0.0
    %2002 = vmatmul.mubr.f32.gmra.mrb[0].mxu0 %v1868
    %v2003 = vpop.f32.mrb[0].mxu0
    %v2004 = vadd.f32 %v1832, %v2003
    %v2005 = vpop.f32.mrb[0].mxu0
    %2006 = vmatprep.mubr.f32.mxu0 0.0
    %2007 = vmatmul.mubr.f32.gmra.mrb[0].mxu0 %v1871
    %v2008 = vpop.f32.mrb[0].mxu0
    %v2009 = vadd.f32 %v1832, %v2008
    %v2010 = vpop.f32.mrb[0].mxu0
    %2011 = vmatprep.mubr.f32.mxu0 0.0
    %2012 = vmatmul.mubr.f32.gmra.mrb[0].mxu0 %v1874
    %v2013 = vpop.f32.mrb[0].mxu0
    %v2014 = vadd.f32 %v1832, %v2013
    %v2015 = vpop.f32.mrb[0].mxu0
    %2016 = vmatprep.mubr.f32.mxu0 0.0
    %2017 = vmatmul.mubr.f32.gmra.mrb[0].mxu0 %v1877
    %v2018 = vpop.f32.mrb[0].mxu0
    %v2019 = vadd.f32 %v1832, %v2018
    %v2020 = vpop.f32.mrb[0].mxu0
    %2021 = vmatprep.mubr.f32.mxu0 0.0
    %2022 = vmatmul.mubr.f32.gmra.mrb[0].mxu0 %v1880
    %v2023 = vpop.f32.mrb[0].mxu0
    %v2024 = vadd.f32 %v1832, %v2023
    %v2025 = vpop.f32.mrb[0].mxu0
    %2026 = vdwg.mxu0
    %v2027 = vadd.f32 %v1949, %v1587
    %v2028 = vadd.f32 %v1954, %v1588
    %v2029 = vadd.f32 %v1959, %v1589
    %v2030 = vadd.f32 %v1964, %v1590
    %v2031 = vadd.f32 %v1969, %v1591
    %v2032 = vadd.f32 %v1974, %v1592
    %v2033 = vadd.f32 %v1979, %v1593
    %v2034 = vadd.f32 %v1984, %v1594
    %v2035 = vadd.f32 %v1989, %v1595
    %v2036 = vadd.f32 %v1994, %v1596
    %v2037 = vadd.f32 %v1999, %v1597
    %v2038 = vadd.f32 %v2004, %v1598
    %v2039 = vadd.f32 %v2009, %v1599
    %v2040 = vadd.f32 %v2014, %v1600
    %v2041 = vadd.f32 %v2019, %v1601
    %v2042 = vadd.f32 %v2024, %v1602
    %v2043 = vmax.f32 %v2027, 0.0
    %v2044 = vmax.f32 %v2028, 0.0
    %v2045 = vmax.f32 %v2029, 0.0
    %v2046 = vmax.f32 %v2030, 0.0
    %v2047 = vmax.f32 %v2031, 0.0
    %v2048 = vmax.f32 %v2032, 0.0
    %v2049 = vmax.f32 %v2033, 0.0
    %v2050 = vmax.f32 %v2034, 0.0
    %v2051 = vmax.f32 %v2035, 0.0
    %v2052 = vmax.f32 %v2036, 0.0
    %v2053 = vmax.f32 %v2037, 0.0
    %v2054 = vmax.f32 %v2038, 0.0
    %v2055 = vmax.f32 %v2039, 0.0
    %v2056 = vmax.f32 %v2040, 0.0
    %v2057 = vmax.f32 %v2041, 0.0
    %v2058 = vmax.f32 %v2042, 0.0
    %v2059 = vsel %vm305, %v2043, -inf
    %v2060 = vsel %vm305, %v2044, -inf
    %v2061 = vmax.f32 %v2059, %v2060
    %v2062 = vrot.slane %v2061, 4
    %v2063 = vmax.f32 %v2061, %v2062
    %v2064 = vrot.slane %v2063, 2
    %v2065 = vmax.f32 %v2063, %v2064
    %v2066 = vrot.slane %v2065, 1
    %v2067 = vmax.f32 %v2065, %v2066
    %v2068 = vsel %vm305, %v2045, -inf
    %v2069 = vsel %vm305, %v2046, -inf
    %v2070 = vmax.f32 %v2068, %v2069
    %v2071 = vrot.slane %v2070, 4
    %v2072 = vmax.f32 %v2070, %v2071
    %v2073 = vrot.slane %v2072, 2
    %v2074 = vmax.f32 %v2072, %v2073
    %v2075 = vrot.slane %v2074, 1
    %v2076 = vmax.f32 %v2074, %v2075
    %v2077 = vsel %vm305, %v2047, -inf
    %v2078 = vsel %vm305, %v2048, -inf
    %v2079 = vmax.f32 %v2077, %v2078
    %v2080 = vrot.slane %v2079, 4
    %v2081 = vmax.f32 %v2079, %v2080
    %v2082 = vrot.slane %v2081, 2
    %v2083 = vmax.f32 %v2081, %v2082
    %v2084 = vrot.slane %v2083, 1
    %v2085 = vmax.f32 %v2083, %v2084
    %v2086 = vsel %vm305, %v2049, -inf
    %v2087 = vsel %vm305, %v2050, -inf
    %v2088 = vmax.f32 %v2086, %v2087
    %v2089 = vrot.slane %v2088, 4
    %v2090 = vmax.f32 %v2088, %v2089
    %v2091 = vrot.slane %v2090, 2
    %v2092 = vmax.f32 %v2090, %v2091
    %v2093 = vrot.slane %v2092, 1
    %v2094 = vmax.f32 %v2092, %v2093
    %v2095 = vsel %vm305, %v2051, -inf
    %v2096 = vsel %vm305, %v2052, -inf
    %v2097 = vmax.f32 %v2095, %v2096
    %v2098 = vrot.slane %v2097, 4
    %v2099 = vmax.f32 %v2097, %v2098
    %v2100 = vrot.slane %v2099, 2
    %v2101 = vmax.f32 %v2099, %v2100
    %v2102 = vrot.slane %v2101, 1
    %v2103 = vmax.f32 %v2101, %v2102
    %v2104 = vsel %vm305, %v2053, -inf
    %v2105 = vsel %vm305, %v2054, -inf
    %v2106 = vmax.f32 %v2104, %v2105
    %v2107 = vrot.slane %v2106, 4
    %v2108 = vmax.f32 %v2106, %v2107
    %v2109 = vrot.slane %v2108, 2
    %v2110 = vmax.f32 %v2108, %v2109
    %v2111 = vrot.slane %v2110, 1
    %v2112 = vmax.f32 %v2110, %v2111
    %v2113 = vsel %vm305, %v2055, -inf
    %v2114 = vsel %vm305, %v2056, -inf
    %v2115 = vmax.f32 %v2113, %v2114
    %v2116 = vrot.slane %v2115, 4
    %v2117 = vmax.f32 %v2115, %v2116
    %v2118 = vrot.slane %v2117, 2
    %v2119 = vmax.f32 %v2117, %v2118
    %v2120 = vrot.slane %v2119, 1
    %v2121 = vmax.f32 %v2119, %v2120
    %v2122 = vsel %vm305, %v2057, -inf
    %v2123 = vsel %vm305, %v2058, -inf
    %v2124 = vmax.f32 %v2122, %v2123
    %v2125 = vrot.slane %v2124, 4
    %v2126 = vmax.f32 %v2124, %v2125
    %v2127 = vrot.slane %v2126, 2
    %v2128 = vmax.f32 %v2126, %v2127
    %v2129 = vrot.slane %v2128, 1
    %v2130 = vmax.f32 %v2128, %v2129
    %v2139 = vsel %vm677, %v2076, %v2067
    %v2140 = vsel %vm679, %v2085, %v2139
    %v2141 = vsel %vm681, %v2094, %v2140
    %v2142 = vsel %vm683, %v2103, %v2141
    %v2143 = vsel %vm685, %v2112, %v2142
    %v2144 = vsel %vm687, %v2121, %v2143
    %v2145 = vsel %vm689, %v2130, %v2144
    %2147 = vst.msk [vmem:[#allocation5] sm:$0xff] %vm305, %v2145
    // Predicated region
    $region54: #{tpu_custom_call.1} parent=1 // pred_check
      _
    $region55: #{tpu_custom_call.1} parent=1 // pred_check_branch
      %2149 = sbr.rel (0) target = $region57
    $region56: #{tpu_custom_call.1} parent=1 // pred_region
      %s2151 = ssub.s32 128, 128
      %2152 = vsyncadd [#allocation3], %s2151
      %s2154 = sshll.u32 [#allocation5], 4
      %s2155 = int_to_ptr.vmem [resolvable:$true] %s2154
      %2157 = dma.vmem_to_hbm [thread:$0]  %s2155, 128, %s12, [#allocation3]
    $region57: #{tpu_custom_call.1} parent=1 // pred_fallthru
      _
    // Predicated region
    $region58: #{tpu_custom_call.1} parent=1 // pred_check
      _
    $region59: #{tpu_custom_call.1} parent=1 // pred_check_branch
      %2159 = sbr.rel (0) target = $region61
    $region60: #{tpu_custom_call.1} parent=1 // pred_region
      %2160 = dma.done [#allocation3], 128
    $region61: #{tpu_custom_call.1} parent=1 // pred_fallthru
      _
    %2161 = vsyncpa [#allocation3], 1
    %2162 = vsyncpa [#allocation4], 1

</llo_original>
